<compile_context>
chip_gen: v6e
topology: v6e:2x2x1
jax: 0.10.0
libtpu: 0.0.40
codegen_flags: <defaults>
</compile_context>

<pallas_src>
import functools

import jax
import jax.numpy as jnp
from jax import lax
from jax.experimental import pallas as pl
from jax.experimental.pallas import tpu as pltpu


def _bottleneck_kernel(TH, W, Cin, P,
                       x_ref, xh_ref,
                       w1_ref, b1_ref,
                       w2_ref, b2_ref,
                       w3_ref, b3_ref,
                       o_ref):
    """Grid = (batch, H row tiles). All tensors NHWC / [spatial, channel].

    x_ref  : (1, TH, W, Cin)   f32   current row tile of the input
    xh_ref : (1, 1, 2*W, Cin)  f32   halo rows (global rows TH*t-1, TH*(t+1))
    w1_ref : (Cin, P)      bf16      1x1 conv, BN1 scale pre-folded
    w2_ref : (9*P, P)      bf16      3x3 conv in im2col layout, BN2 scale folded
    w3_ref : (P, 4*P)      bf16      1x1 conv, BN3 scale pre-folded
    b*     : (1, C)        f32       folded BatchNorm biases
    """
    t = pl.program_id(1)
    nt = pl.num_programs(1)
    Cexp = 4 * P

    x = x_ref[0].reshape(TH * W, Cin)                       # f32 (residual path)
    xh = xh_ref[0, 0]                                       # f32 [2W, Cin]

    # ---- conv1 (1x1) + bias + relu: tile rows and halo rows in ONE matmul ----
    xin = jnp.concatenate([x.astype(jnp.bfloat16),
                           xh.astype(jnp.bfloat16)], axis=0)  # [(TH+2)*W, Cin]
    h1_all = jnp.dot(xin, w1_ref[...], preferred_element_type=jnp.float32)
    # Single bf16 cast here; everything conv2 touches stays bf16 from now on.
    h1_all = jnp.maximum(h1_all + b1_ref[...], 0.0).astype(jnp.bfloat16)

    h1 = h1_all[:TH * W].reshape(TH, W, P)                  # bf16 tile activations
    hh = h1_all[TH * W:].reshape(2, W, P)                   # bf16 halo activations
    # conv2 zero-pads its *activation* input, so halo rows that fall outside
    # the image must be exactly zero (not relu(bn1 bias)).
    zero_row = jnp.zeros((W, P), jnp.bfloat16)
    top = jnp.where(t > 0, hh[0], zero_row)
    bot = jnp.where(t < nt - 1, hh[1], zero_row)

    # ---- conv2 (3x3, stride 1, pad 1) + bias + relu ----
    # bf16 im2col with only THREE width (sublane) shifts of the padded block;
    # the three height taps are leading-axis slices (free). All nine taps are
    # folded into a single MXU matmul [TH*W, 9P] @ [9P, P].
    rows = jnp.concatenate([top[None], h1, bot[None]], axis=0)   # [TH+2, W, P]
    zcol = jnp.zeros((TH + 2, 1, P), jnp.bfloat16)
    padded = jnp.concatenate([zcol, rows, zcol], axis=1)         # [TH+2, W+2, P]
    shifted = [padded[:, dx:dx + W, :] for dx in range(3)]       # 3 width shifts
    cols = jnp.concatenate(
        [shifted[dx][dy:dy + TH] for dy in range(3) for dx in range(3)],
        axis=-1).reshape(TH * W, 9 * P)                          # bf16 [TH*W, 9P]
    h2 = jnp.dot(cols, w2_ref[...], preferred_element_type=jnp.float32)
    h2 = jnp.maximum(h2 + b2_ref[...], 0.0)

    # ---- conv3 (1x1) + bias + residual add + relu (f32 epilogue) ----
    h3 = jnp.dot(h2.astype(jnp.bfloat16), w3_ref[...],
                 preferred_element_type=jnp.float32)             # [TH*W, 4P]
    out = jnp.maximum(h3 + b3_ref[...] + x, 0.0)                 # Cin == 4P
    o_ref[0] = out.reshape(TH, W, Cexp).astype(o_ref.dtype)


def _choose_row_tile(H, W, target_m=256, max_rows=32):
    """Smallest divisor TH of H (<= max_rows) with TH*W >= target_m, so the
    matmul M-dimension fills the 256-wide MXU on v6e/v7x while keeping the
    per-step VMEM footprint bounded. Falls back to the largest divisor."""
    divs = [d for d in range(1, min(H, max_rows) + 1) if H % d == 0]
    for d in divs:
        if d * W >= target_m:
            return d
    return divs[-1]


def _row_halos(x, th):
    """x: [N,H,W,C] NHWC -> [N, H//th, 2*W, C].

    For row tile t the two halo rows are global rows (t*th - 1) and
    ((t+1)*th); rows outside the image are zeros (re-masked in-kernel anyway).
    Built from strided slices of x, so the extra HBM traffic is ~2 rows per
    tile instead of full copies of x."""
    N, H, W, C = x.shape
    nt = H // th
    zrow = jnp.zeros((N, 1, W, C), x.dtype)
    tops = x[:, th - 1:H - 1:th]                  # rows t*th-1 for t=1..nt-1
    top = jnp.concatenate([zrow, tops], axis=1)   # [N, nt, W, C]
    bots = x[:, th::th]                           # rows (t+1)*th for t=0..nt-2
    bot = jnp.concatenate([bots, zrow], axis=1)   # [N, nt, W, C]
    return jnp.concatenate([top, bot], axis=2)    # [N, nt, 2W, C]


def bottleneck_forward_nhwc(x, params, row_tile=None,
                            vmem_limit_bytes=48 * 1024 * 1024):
    """x: [N, H, W, C] channels-last (C on TPU lanes). Returns NHWC."""
    N, H, W, C = x.shape
    P = params["w1"].shape[1]
    Cexp = 4 * P
    assert C == Cexp, "downsample is None => inplanes must equal planes*4"
    th = _choose_row_tile(H, W) if row_tile is None else row_tile
    assert H % th == 0, "row tile must divide H (chooser only picks divisors)"
    nt = H // th

    xh = _row_halos(x, th)

    # Fold eval-mode BN scale into the conv weights in f32 (one bf16 cast);
    # only the bias-add + relu epilogues remain in the kernel.
    w1 = (params["w1"] * params["s1"]).astype(jnp.bfloat16)            # [C, P]
    w2 = (params["w2"] * params["s2"].reshape(1, 1, 1, P)
          ).reshape(9 * P, P).astype(jnp.bfloat16)                     # [9P, P]
    w3 = (params["w3"] * params["s3"]).astype(jnp.bfloat16)            # [P, 4P]

    kernel = functools.partial(_bottleneck_kernel, th, W, C, P)
    const = lambda b, t: (0, 0)

    out = pl.pallas_call(
        kernel,
        out_shape=jax.ShapeDtypeStruct((N, H, W, Cexp), x.dtype),
        grid_spec=pltpu.PrefetchScalarGridSpec(
            num_scalar_prefetch=0,
            grid=(N, nt),
            in_specs=[
                pl.BlockSpec((1, th, W, C), lambda b, t: (b, t, 0, 0)),     # x tile
                pl.BlockSpec((1, 1, 2 * W, C), lambda b, t: (b, t, 0, 0)),  # halo rows
                # Grid-invariant weights / biases (constant index maps ->
                # fetched once).
                pl.BlockSpec((C, P), const),        # w1 (scale-folded)
                pl.BlockSpec((1, P), const),        # bn1 bias
                pl.BlockSpec((9 * P, P), const),    # w2 (im2col, scale-folded)
                pl.BlockSpec((1, P), const),        # bn2 bias
                pl.BlockSpec((P, Cexp), const),     # w3 (scale-folded)
                pl.BlockSpec((1, Cexp), const),     # bn3 bias
            ],
            out_specs=pl.BlockSpec((1, th, W, Cexp), lambda b, t: (b, t, 0, 0)),
        ),
        compiler_params=pltpu.CompilerParams(
            # Both grid axes are independent -> megacore can split either.
            dimension_semantics=("parallel", "parallel"),
            # Above the 16/32 MiB scoped defaults (v5e/v6e), below v7x's
            # 64 MiB physical VMEM per core.
            vmem_limit_bytes=vmem_limit_bytes),
    )(x, xh, w1, params["b1"], w2, params["b2"], w3, params["b3"])
    return out


def bottleneck_forward(x_nchw, params, row_tile=None):
    """NCHW (PyTorch layout) adapter. Prefer the NHWC entry point in an
    NHWC-native model to skip these two HBM transpose passes."""
    x = jnp.transpose(x_nchw, (0, 2, 3, 1))                    # NCHW -> NHWC
    out = bottleneck_forward_nhwc(x, params, row_tile=row_tile)
    return jnp.transpose(out, (0, 3, 1, 2))                    # NHWC -> NCHW


def _fold_bn(key, c, eps=1e-5):
    """Deterministic synthetic BN params folded to per-channel scale/bias."""
    k1, k2, k3, k4 = jax.random.split(key, 4)
    gamma = 1.0 + 0.1 * jax.random.normal(k1, (c,), jnp.float32)
    beta = 0.1 * jax.random.normal(k2, (c,), jnp.float32)
    mean = 0.1 * jax.random.normal(k3, (c,), jnp.float32)
    var = jax.random.uniform(k4, (c,), jnp.float32, 0.5, 1.5)
    scale = gamma / jnp.sqrt(var + eps)
    bias = beta - mean * scale
    return scale.reshape(1, c), bias.reshape(1, c)


def make_params(key, inplanes, planes):
    ks = jax.random.split(key, 6)
    w1 = 0.1 * jax.random.normal(ks[0], (inplanes, planes), jnp.float32)        # [Cin, P]
    w2 = 0.1 * jax.random.normal(ks[1], (3, 3, planes, planes), jnp.float32)    # HWIO
    w3 = 0.1 * jax.random.normal(ks[2], (planes, planes * 4), jnp.float32)      # [P, 4P]
    s1, b1 = _fold_bn(ks[3], planes)
    s2, b2 = _fold_bn(ks[4], planes)
    s3, b3 = _fold_bn(ks[5], planes * 4)
    return dict(w1=w1, s1=s1, b1=b1, w2=w2, s2=s2, b2=b2, w3=w3, s3=s3, b3=b3)


def ref_forward(x_nchw, params):
    """Pure-JAX f32 reference of the same eval-mode forward pass."""
    x = jnp.transpose(x_nchw, (0, 2, 3, 1))
    h1 = jnp.einsum("nhwc,cp->nhwp", x, params["w1"])
    h1 = jnp.maximum(h1 * params["s1"] + params["b1"], 0.0)
    h2 = lax.conv_general_dilated(h1, params["w2"], (1, 1), "SAME",
                                  dimension_numbers=("NHWC", "HWIO", "NHWC"))
    h2 = jnp.maximum(h2 * params["s2"] + params["b2"], 0.0)
    h3 = jnp.einsum("nhwp,pq->nhwq", h2, params["w3"])
    h3 = h3 * params["s3"] + params["b3"]
    out = jnp.maximum(h3 + x, 0.0)
    return jnp.transpose(out, (0, 3, 1, 2))


if __name__ == "__main__":
    # Small but lane-friendly shapes: planes=32 -> Cexp = 128, so the output,
    # residual path and conv1 contraction are lane-dense. The tile chooser
    # picks TH=16 here (TH*W = 256 -> full 256-wide MXU M fill on v6e/v7x).
    N, planes, H, W = 2, 32, 16, 16
    inplanes = planes * 4                    # downsample=None => residual matches

    key = jax.random.PRNGKey(0)
    kx, kp = jax.random.split(key)
    x = jax.random.normal(kx, (N, inplanes, H, W), jnp.float32)   # NCHW like PyTorch
    params = make_params(kp, inplanes, planes)

    out = jax.block_until_ready(jax.jit(bottleneck_forward)(x, params))
    ref = jax.block_until_ready(ref_forward(x, params))

    assert out.shape == (N, inplanes, H, W)
    max_err = float(jnp.max(jnp.abs(out - ref)))
    # bf16 MXU operands (activations + scale-folded weights) across three
    # matmuls vs. a pure-f32 reference -> ~1-2% relative error expected.
    assert jnp.allclose(out, ref, atol=5e-2, rtol=5e-2), max_err

    print("KERNEL_OK")
</pallas_src>

<mosaic_0001>
module attributes {stable_mosaic.version = 11 : i64} {
  func.func @_bottleneck_kernel(%arg0: i32, %arg1: i32, %arg2: memref<1x16x16x128xf32, #tpu.memory_space<vmem>>, %arg3: memref<1x1x32x128xf32, #tpu.memory_space<vmem>>, %arg4: memref<128x32xbf16, #tpu.memory_space<vmem>>, %arg5: memref<1x32xf32, #tpu.memory_space<vmem>>, %arg6: memref<288x32xbf16, #tpu.memory_space<vmem>>, %arg7: memref<1x32xf32, #tpu.memory_space<vmem>>, %arg8: memref<32x128xbf16, #tpu.memory_space<vmem>>, %arg9: memref<1x128xf32, #tpu.memory_space<vmem>>, %arg10: memref<1x16x16x128xf32, #tpu.memory_space<vmem>>) attributes {dimension_semantics = [#tpu.dimension_semantics<parallel>, #tpu.dimension_semantics<parallel>], iteration_bounds = array<i64: 2, 1>, scalar_prefetch = 0 : i64, scratch_operands = 0 : i64, tpu.core_type = #tpu.core_type<tc>, window_params = [{transform_indices = @transform_0, window_bounds = array<i64: 1, 16, 16, 128>}, {transform_indices = @transform_1, window_bounds = array<i64: 1, 1, 32, 128>}, {pipeline_mode = #tpu.pipeline_mode<synchronous>, transform_indices = @transform_2, window_bounds = array<i64: 128, 32>}, {pipeline_mode = #tpu.pipeline_mode<synchronous>, transform_indices = @transform_3, window_bounds = array<i64: 1, 32>}, {pipeline_mode = #tpu.pipeline_mode<synchronous>, transform_indices = @transform_4, window_bounds = array<i64: 288, 32>}, {pipeline_mode = #tpu.pipeline_mode<synchronous>, transform_indices = @transform_5, window_bounds = array<i64: 1, 32>}, {pipeline_mode = #tpu.pipeline_mode<synchronous>, transform_indices = @transform_6, window_bounds = array<i64: 32, 128>}, {pipeline_mode = #tpu.pipeline_mode<synchronous>, transform_indices = @transform_7, window_bounds = array<i64: 1, 128>}, {transform_indices = @transform_8, window_bounds = array<i64: 1, 16, 16, 128>}]} {
    %c0 = arith.constant 0 : index
    %c0_0 = arith.constant 0 : index
    %c0_1 = arith.constant 0 : index
    %c0_2 = arith.constant 0 : index
    %0 = vector.load %arg2[%c0, %c0_0, %c0_1, %c0_2] : memref<1x16x16x128xf32, #tpu.memory_space<vmem>>, vector<1x16x16x128xf32>
    %1 = vector.shape_cast %0 : vector<1x16x16x128xf32> to vector<16x16x128xf32>
    %2 = vector.shape_cast %1 : vector<16x16x128xf32> to vector<256x128xf32>
    %c0_3 = arith.constant 0 : index
    %c0_4 = arith.constant 0 : index
    %c0_5 = arith.constant 0 : index
    %c0_6 = arith.constant 0 : index
    %3 = vector.load %arg3[%c0_3, %c0_4, %c0_5, %c0_6] : memref<1x1x32x128xf32, #tpu.memory_space<vmem>>, vector<1x1x32x128xf32>
    %4 = vector.shape_cast %3 : vector<1x1x32x128xf32> to vector<32x128xf32>
    %5 = arith.truncf %2 : vector<256x128xf32> to vector<256x128xbf16>
    %6 = arith.truncf %4 : vector<32x128xf32> to vector<32x128xbf16>
    %7 = tpu.concatenate %5, %6 in 0 : vector<256x128xbf16>, vector<32x128xbf16> -> vector<288x128xbf16>
    %c0_7 = arith.constant 0 : index
    %c0_8 = arith.constant 0 : index
    %8 = vector.load %arg4[%c0_7, %c0_8] : memref<128x32xbf16, #tpu.memory_space<vmem>>, vector<128x32xbf16>
    %cst = arith.constant dense<0.000000e+00> : vector<288x32xf32>
    %9 = tpu.matmul %7, %8, %cst {dimension_numbers = #tpu.dot_dimension_numbers<[1], [0], [0], [1], [0, 0, 1, 1], [], []>} : vector<288x128xbf16>, vector<128x32xbf16>, vector<288x32xf32> -> vector<288x32xf32>
    %c0_9 = arith.constant 0 : index
    %c0_10 = arith.constant 0 : index
    %10 = vector.load %arg5[%c0_9, %c0_10] : memref<1x32xf32, #tpu.memory_space<vmem>>, vector<1x32xf32>
    %11 = vector.broadcast %10 : vector<1x32xf32> to vector<288x32xf32>
    %12 = arith.addf %9, %11 : vector<288x32xf32>
    %cst_11 = arith.constant 0.000000e+00 : f32
    %13 = vector.broadcast %cst_11 : f32 to vector<288x32xf32>
    %14 = arith.maximumf %12, %13 : vector<288x32xf32>
    %15 = arith.truncf %14 : vector<288x32xf32> to vector<288x32xbf16>
    %16 = vector.extract_strided_slice %15 {offsets = [0, 0], sizes = [256, 32], strides = [1, 1]} : vector<288x32xbf16> to vector<256x32xbf16>
    %17 = vector.shape_cast %16 : vector<256x32xbf16> to vector<16x16x32xbf16>
    %18 = vector.extract_strided_slice %15 {offsets = [256, 0], sizes = [32, 32], strides = [1, 1]} : vector<288x32xbf16> to vector<32x32xbf16>
    %19 = vector.shape_cast %18 : vector<32x32xbf16> to vector<2x16x32xbf16>
    %cst_12 = arith.constant 0.000000e+00 : bf16
    %20 = vector.broadcast %cst_12 : bf16 to vector<16x32xbf16>
    %c0_i32 = arith.constant 0 : i32
    %21 = arith.cmpi sgt, %arg1, %c0_i32 : i32
    %22 = vector.extract_strided_slice %19 {offsets = [0, 0, 0], sizes = [1, 16, 32], strides = [1, 1, 1]} : vector<2x16x32xbf16> to vector<1x16x32xbf16>
    %23 = vector.shape_cast %22 : vector<1x16x32xbf16> to vector<16x32xbf16>
    %24 = arith.select %21, %23, %20 : vector<16x32xbf16>
    %c0_i32_13 = arith.constant 0 : i32
    %25 = arith.cmpi slt, %arg1, %c0_i32_13 : i32
    %26 = vector.extract_strided_slice %19 {offsets = [1, 0, 0], sizes = [1, 16, 32], strides = [1, 1, 1]} : vector<2x16x32xbf16> to vector<1x16x32xbf16>
    %27 = vector.shape_cast %26 : vector<1x16x32xbf16> to vector<16x32xbf16>
    %28 = arith.select %25, %27, %20 : vector<16x32xbf16>
    %29 = vector.shape_cast %24 : vector<16x32xbf16> to vector<1x16x32xbf16>
    %30 = vector.shape_cast %28 : vector<16x32xbf16> to vector<1x16x32xbf16>
    %31 = tpu.concatenate %29, %17, %30 in 0 : vector<1x16x32xbf16>, vector<16x16x32xbf16>, vector<1x16x32xbf16> -> vector<18x16x32xbf16>
    %cst_14 = arith.constant 0.000000e+00 : bf16
    %32 = vector.broadcast %cst_14 : bf16 to vector<18x1x32xbf16>
    %33 = tpu.concatenate %32, %31, %32 in 1 : vector<18x1x32xbf16>, vector<18x16x32xbf16>, vector<18x1x32xbf16> -> vector<18x18x32xbf16>
    %34 = vector.extract_strided_slice %33 {offsets = [0, 0, 0], sizes = [18, 16, 32], strides = [1, 1, 1]} : vector<18x18x32xbf16> to vector<18x16x32xbf16>
    %35 = vector.extract_strided_slice %33 {offsets = [0, 1, 0], sizes = [18, 16, 32], strides = [1, 1, 1]} : vector<18x18x32xbf16> to vector<18x16x32xbf16>
    %36 = vector.extract_strided_slice %33 {offsets = [0, 2, 0], sizes = [18, 16, 32], strides = [1, 1, 1]} : vector<18x18x32xbf16> to vector<18x16x32xbf16>
    %37 = vector.extract_strided_slice %34 {offsets = [0, 0, 0], sizes = [16, 16, 32], strides = [1, 1, 1]} : vector<18x16x32xbf16> to vector<16x16x32xbf16>
    %38 = vector.extract_strided_slice %35 {offsets = [0, 0, 0], sizes = [16, 16, 32], strides = [1, 1, 1]} : vector<18x16x32xbf16> to vector<16x16x32xbf16>
    %39 = vector.extract_strided_slice %36 {offsets = [0, 0, 0], sizes = [16, 16, 32], strides = [1, 1, 1]} : vector<18x16x32xbf16> to vector<16x16x32xbf16>
    %40 = vector.extract_strided_slice %34 {offsets = [1, 0, 0], sizes = [16, 16, 32], strides = [1, 1, 1]} : vector<18x16x32xbf16> to vector<16x16x32xbf16>
    %41 = vector.extract_strided_slice %35 {offsets = [1, 0, 0], sizes = [16, 16, 32], strides = [1, 1, 1]} : vector<18x16x32xbf16> to vector<16x16x32xbf16>
    %42 = vector.extract_strided_slice %36 {offsets = [1, 0, 0], sizes = [16, 16, 32], strides = [1, 1, 1]} : vector<18x16x32xbf16> to vector<16x16x32xbf16>
    %43 = vector.extract_strided_slice %34 {offsets = [2, 0, 0], sizes = [16, 16, 32], strides = [1, 1, 1]} : vector<18x16x32xbf16> to vector<16x16x32xbf16>
    %44 = vector.extract_strided_slice %35 {offsets = [2, 0, 0], sizes = [16, 16, 32], strides = [1, 1, 1]} : vector<18x16x32xbf16> to vector<16x16x32xbf16>
    %45 = vector.extract_strided_slice %36 {offsets = [2, 0, 0], sizes = [16, 16, 32], strides = [1, 1, 1]} : vector<18x16x32xbf16> to vector<16x16x32xbf16>
    %46 = tpu.concatenate %37, %38, %39, %40, %41, %42, %43, %44, %45 in 2 : vector<16x16x32xbf16>, vector<16x16x32xbf16>, vector<16x16x32xbf16>, vector<16x16x32xbf16>, vector<16x16x32xbf16>, vector<16x16x32xbf16>, vector<16x16x32xbf16>, vector<16x16x32xbf16>, vector<16x16x32xbf16> -> vector<16x16x288xbf16>
    %47 = vector.shape_cast %46 : vector<16x16x288xbf16> to vector<256x288xbf16>
    %c0_15 = arith.constant 0 : index
    %c0_16 = arith.constant 0 : index
    %48 = vector.load %arg6[%c0_15, %c0_16] : memref<288x32xbf16, #tpu.memory_space<vmem>>, vector<288x32xbf16>
    %cst_17 = arith.constant dense<0.000000e+00> : vector<256x32xf32>
    %49 = tpu.matmul %47, %48, %cst_17 {dimension_numbers = #tpu.dot_dimension_numbers<[1], [0], [0], [1], [0, 0, 1, 1], [], []>} : vector<256x288xbf16>, vector<288x32xbf16>, vector<256x32xf32> -> vector<256x32xf32>
    %c0_18 = arith.constant 0 : index
    %c0_19 = arith.constant 0 : index
    %50 = vector.load %arg7[%c0_18, %c0_19] : memref<1x32xf32, #tpu.memory_space<vmem>>, vector<1x32xf32>
    %51 = vector.broadcast %50 : vector<1x32xf32> to vector<256x32xf32>
    %52 = arith.addf %49, %51 : vector<256x32xf32>
    %cst_20 = arith.constant 0.000000e+00 : f32
    %53 = vector.broadcast %cst_20 : f32 to vector<256x32xf32>
    %54 = arith.maximumf %52, %53 : vector<256x32xf32>
    %55 = arith.truncf %54 : vector<256x32xf32> to vector<256x32xbf16>
    %c0_21 = arith.constant 0 : index
    %c0_22 = arith.constant 0 : index
    %56 = vector.load %arg8[%c0_21, %c0_22] : memref<32x128xbf16, #tpu.memory_space<vmem>>, vector<32x128xbf16>
    %cst_23 = arith.constant dense<0.000000e+00> : vector<256x128xf32>
    %57 = tpu.matmul %55, %56, %cst_23 {dimension_numbers = #tpu.dot_dimension_numbers<[1], [0], [0], [1], [0, 0, 1, 1], [], []>} : vector<256x32xbf16>, vector<32x128xbf16>, vector<256x128xf32> -> vector<256x128xf32>
    %c0_24 = arith.constant 0 : index
    %c0_25 = arith.constant 0 : index
    %58 = vector.load %arg9[%c0_24, %c0_25] : memref<1x128xf32, #tpu.memory_space<vmem>>, vector<1x128xf32>
    %59 = vector.broadcast %58 : vector<1x128xf32> to vector<256x128xf32>
    %60 = arith.addf %57, %59 : vector<256x128xf32>
    %61 = arith.addf %60, %2 : vector<256x128xf32>
    %cst_26 = arith.constant 0.000000e+00 : f32
    %62 = vector.broadcast %cst_26 : f32 to vector<256x128xf32>
    %63 = arith.maximumf %61, %62 : vector<256x128xf32>
    %64 = vector.shape_cast %63 : vector<256x128xf32> to vector<16x16x128xf32>
    %c0_27 = arith.constant 0 : index
    %c0_28 = arith.constant 0 : index
    %c0_29 = arith.constant 0 : index
    %c0_30 = arith.constant 0 : index
    %65 = vector.load %arg10[%c0_27, %c0_28, %c0_29, %c0_30] : memref<1x16x16x128xf32, #tpu.memory_space<vmem>>, vector<1x16x16x128xf32>
    %66 = vector.shape_cast %65 : vector<1x16x16x128xf32> to vector<16x16x128xf32>
    %67 = vector.shape_cast %64 : vector<16x16x128xf32> to vector<1x16x16x128xf32>
    tpu.vector_store %arg10[%c0_27, %c0_28, %c0_29, %c0_30], %67 {strides = array<i32>} : memref<1x16x16x128xf32, #tpu.memory_space<vmem>>, vector<1x16x16x128xf32>,
    return
  }
  func.func @transform_0(%arg0: i32, %arg1: i32) -> (i32, i32, i32, i32) {
    %c0_i32 = arith.constant 0 : i32
    %c0_i32_0 = arith.constant 0 : i32
    %c0_i32_1 = arith.constant 0 : i32
    return %arg0, %arg1, %c0_i32, %c0_i32_0 : i32, i32, i32, i32
  }
  func.func @transform_1(%arg0: i32, %arg1: i32) -> (i32, i32, i32, i32) {
    %c0_i32 = arith.constant 0 : i32
    %c0_i32_0 = arith.constant 0 : i32
    %c0_i32_1 = arith.constant 0 : i32
    return %arg0, %arg1, %c0_i32, %c0_i32_0 : i32, i32, i32, i32
  }
  func.func @transform_2(%arg0: i32, %arg1: i32) -> (i32, i32) {
    %c0_i32 = arith.constant 0 : i32
    %c0_i32_0 = arith.constant 0 : i32
    %c0_i32_1 = arith.constant 0 : i32
    return %c0_i32, %c0_i32_0 : i32, i32
  }
  func.func @transform_3(%arg0: i32, %arg1: i32) -> (i32, i32) {
    %c0_i32 = arith.constant 0 : i32
    %c0_i32_0 = arith.constant 0 : i32
    %c0_i32_1 = arith.constant 0 : i32
    return %c0_i32, %c0_i32_0 : i32, i32
  }
  func.func @transform_4(%arg0: i32, %arg1: i32) -> (i32, i32) {
    %c0_i32 = arith.constant 0 : i32
    %c0_i32_0 = arith.constant 0 : i32
    %c0_i32_1 = arith.constant 0 : i32
    return %c0_i32, %c0_i32_0 : i32, i32
  }
  func.func @transform_5(%arg0: i32, %arg1: i32) -> (i32, i32) {
    %c0_i32 = arith.constant 0 : i32
    %c0_i32_0 = arith.constant 0 : i32
    %c0_i32_1 = arith.constant 0 : i32
    return %c0_i32, %c0_i32_0 : i32, i32
  }
  func.func @transform_6(%arg0: i32, %arg1: i32) -> (i32, i32) {
    %c0_i32 = arith.constant 0 : i32
    %c0_i32_0 = arith.constant 0 : i32
    %c0_i32_1 = arith.constant 0 : i32
    return %c0_i32, %c0_i32_0 : i32, i32
  }
  func.func @transform_7(%arg0: i32, %arg1: i32) -> (i32, i32) {
    %c0_i32 = arith.constant 0 : i32
    %c0_i32_0 = arith.constant 0 : i32
    %c0_i32_1 = arith.constant 0 : i32
    return %c0_i32, %c0_i32_0 : i32, i32
  }
  func.func @transform_8(%arg0: i32, %arg1: i32) -> (i32, i32, i32, i32) {
    %c0_i32 = arith.constant 0 : i32
    %c0_i32_0 = arith.constant 0 : i32
    %c0_i32_1 = arith.constant 0 : i32
    return %arg0, %arg1, %c0_i32, %c0_i32_0 : i32, i32, i32, i32
  }
}

</mosaic_0001>

<llo_original>
// kernel: bottleneck_forward.1
$region0: #{bottleneck_forward.1}
  #allocation0 [shape = 'u32[]', space=smem, size = 0x4, offset = 0x4, fixed_abs, tag = 'smem constant byte address 0x4 - core index']
  #allocation1 [shape = 'u32[144,128]{1,0:T(1,128)}', space=vmem, size = 0x12000, scoped, tag = 'internal scratch']
  %s0 = inlined_call_operand.vmem [shape: f32[2,16,16,128], index: 0, kind: input, shape index: {}]
  %s1 = inlined_call_operand.vmem [shape: f32[2,1,32,128], index: 1, kind: input, shape index: {}]
  %s2 = inlined_call_operand.vmem [shape: bf16[128,32], index: 2, kind: input, shape index: {}]
  %s3 = inlined_call_operand.vmem [shape: f32[1,32], index: 3, kind: input, shape index: {}]
  %s4 = inlined_call_operand.vmem [shape: bf16[288,32], index: 4, kind: input, shape index: {}]
  %s5 = inlined_call_operand.vmem [shape: f32[1,32], index: 5, kind: input, shape index: {}]
  %s6 = inlined_call_operand.vmem [shape: bf16[32,128], index: 6, kind: input, shape index: {}]
  %s7 = inlined_call_operand.vmem [shape: f32[1,128], index: 7, kind: input, shape index: {}]
  %s8 = inlined_call_operand.hbm [shape: f32[2,16,16,128], index: 8, kind: output, shape index: {}]
  %s9 = sld [smem:[#allocation0]]
  $region65: #{bottleneck_forward.1} parent=0
    _
  %s11 = ssub.s32 1, %s9
  %s12 = scalar_select 0, %s11, %s9
  $region1: #{bottleneck_forward.1} parent=0
    #allocation2 [shape = 'u8[262144]{0}', space=vmem, size = 0x40000, scoped, tag = 'output window, operand 0']
    #allocation3 [shape = 's32[2]{0}', space=sflag, size = 0x8, scoped, tag = 'scoped memory for bottleneck_forward.1']
    %13 = vsyncpa [#allocation3], 0
    %s14 = scalar_lea.sflag [#allocation3], 1
    %15 = vsyncpa %s14, 0
    loop: start=0, step=1, limit=4
    $region2: #{bottleneck_forward.1} parent=1 // loop_pre_header
      _
    $region3: #{bottleneck_forward.1} parent=1 // loop_header
      %s17 = sphi 0, %s21
      %p18 = scmp.ge.s32.totalorder %s17, 4
      %s24 = sphi 0, %s36
      %s25 = sphi 0, %s32
      %s26 = sphi 0, %s24
      %s27 = sphi 0, %s25
      %s28 = sphi 0, %s26
      %s29 = sphi 0, %s27
      %s41 = sphi 0, %s43
      %s44 = sphi 0, %s41
      %s45 = sphi 0, %s44
      %s61 = sphi 0, %s45
      %s69 = sphi 0, %s71
      %s72 = sphi 0, %s69
      %s73 = sphi 0, %s72
      %s89 = sphi 0, %s73
      %s93 = sphi 0, %s93
      %s95 = sphi 0, %s93
      %s96 = sphi 0, %s95
      %s110 = sphi 0, %s96
      %s114 = sphi 0, %s114
      %s116 = sphi 0, %s114
      %s117 = sphi 0, %s116
      %s131 = sphi 0, %s117
      %s135 = sphi 0, %s135
      %s137 = sphi 0, %s135
      %s138 = sphi 0, %s137
      %s152 = sphi 0, %s138
      %s156 = sphi 0, %s156
      %s158 = sphi 0, %s156
      %s159 = sphi 0, %s158
      %s173 = sphi 0, %s159
      %s177 = sphi 0, %s177
      %s179 = sphi 0, %s177
      %s180 = sphi 0, %s179
      %s194 = sphi 0, %s180
      %s198 = sphi 0, %s198
      %s200 = sphi 0, %s198
      %s201 = sphi 0, %s200
      %s215 = sphi 0, %s201
      %s223 = sphi 0, %s225
      %s226 = sphi 0, %s223
      %s227 = sphi 0, %s226
      %s243 = sphi 0, %s227
    $region4: #{bottleneck_forward.1} parent=1 // loop_header_branch
      %20 = sbr.rel (%p18) target = $region8
    $region5: #{bottleneck_forward.1} parent=1 // loop_body
      %s22 = ssub.s32 %s17, 1
      %s23 = ssub.s32 %s17, 2
      %s30 = sadd.s32 1, %s25
      %p31 = scmp.ge.s32.totalorder %s30, 1
      %s32 = scalar_select %p31, 0, %s30
      %s33 = sadd.s32 1, %s24
      %s34 = scalar_select %p31, %s33, %s24
      %p35 = scmp.ge.s32.totalorder %s34, 2
      %s36 = scalar_select %p35, 0, %s34
      %s37 = ssub.s32 %s24, %s36
      %s38 = ssub.s32 %s25, %s32
      %s39 = sor.u32 %s37, %s38
      %p40 = scmp.eq.s32.totalorder %s39, 0
      %s42 = sadd.s32 %s41, 1
      %s43 = scalar_select %p40, %s41, %s42
      %p46 = pneg %p40
      %p47 = scmp.eq.s32.totalorder %s17, 1
      %p48 = por %p46, %p47
      %p49 = scmp.ne.s32.totalorder %s41, %s44
      %p50 = scmp.eq.s32.totalorder %s17, 0
      %p51 = por %p49, %p50
      %p52 = scmp.ne.s32.totalorder %s41, %s44
      %p53 = scmp.eq.s32.totalorder %s22, 1
      %p54 = por %p52, %p53
      %p55 = scmp.ne.s32.totalorder %s44, %s45
      %p56 = scmp.eq.s32.totalorder %s22, 0
      %p57 = por %p55, %p56
      %p58 = scmp.ne.s32.totalorder %s44, %s45
      %p59 = scmp.eq.s32.totalorder %s23, 1
      %p60 = por %p58, %p59
      %p62 = scmp.ne.s32.totalorder %s45, %s61
      %p63 = scmp.eq.s32.totalorder %s23, 0
      %p64 = por %p62, %p63
      %s65 = ssub.s32 %s24, %s36
      %s66 = ssub.s32 %s25, %s32
      %s67 = sor.u32 %s65, %s66
      %p68 = scmp.eq.s32.totalorder %s67, 0
      %s70 = sadd.s32 %s69, 1
      %s71 = scalar_select %p68, %s69, %s70
      %p74 = pneg %p68
      %p75 = scmp.eq.s32.totalorder %s17, 1
      %p76 = por %p74, %p75
      %p77 = scmp.ne.s32.totalorder %s69, %s72
      %p78 = scmp.eq.s32.totalorder %s17, 0
      %p79 = por %p77, %p78
      %p80 = scmp.ne.s32.totalorder %s69, %s72
      %p81 = scmp.eq.s32.totalorder %s22, 1
      %p82 = por %p80, %p81
      %p83 = scmp.ne.s32.totalorder %s72, %s73
      %p84 = scmp.eq.s32.totalorder %s22, 0
      %p85 = por %p83, %p84
      %p86 = scmp.ne.s32.totalorder %s72, %s73
      %p87 = scmp.eq.s32.totalorder %s23, 1
      %p88 = por %p86, %p87
      %p90 = scmp.ne.s32.totalorder %s73, %s89
      %p91 = scmp.eq.s32.totalorder %s23, 0
      %p92 = por %p90, %p91
      %s94 = sadd.s32 %s93, 1
      %p97 = scmp.eq.s32.totalorder %s17, 1
      %p98 = scmp.ne.s32.totalorder %s93, %s95
      %p99 = scmp.eq.s32.totalorder %s17, 0
      %p100 = por %p98, %p99
      %p101 = scmp.ne.s32.totalorder %s93, %s95
      %p102 = scmp.eq.s32.totalorder %s22, 1
      %p103 = por %p101, %p102
      %p104 = scmp.ne.s32.totalorder %s95, %s96
      %p105 = scmp.eq.s32.totalorder %s22, 0
      %p106 = por %p104, %p105
      %p107 = scmp.ne.s32.totalorder %s95, %s96
      %p108 = scmp.eq.s32.totalorder %s23, 1
      %p109 = por %p107, %p108
      %p111 = scmp.ne.s32.totalorder %s96, %s110
      %p112 = scmp.eq.s32.totalorder %s23, 0
      %p113 = por %p111, %p112
      %s115 = sadd.s32 %s114, 1
      %p118 = scmp.eq.s32.totalorder %s17, 1
      %p119 = scmp.ne.s32.totalorder %s114, %s116
      %p120 = scmp.eq.s32.totalorder %s17, 0
      %p121 = por %p119, %p120
      %p122 = scmp.ne.s32.totalorder %s114, %s116
      %p123 = scmp.eq.s32.totalorder %s22, 1
      %p124 = por %p122, %p123
      %p125 = scmp.ne.s32.totalorder %s116, %s117
      %p126 = scmp.eq.s32.totalorder %s22, 0
      %p127 = por %p125, %p126
      %p128 = scmp.ne.s32.totalorder %s116, %s117
      %p129 = scmp.eq.s32.totalorder %s23, 1
      %p130 = por %p128, %p129
      %p132 = scmp.ne.s32.totalorder %s117, %s131
      %p133 = scmp.eq.s32.totalorder %s23, 0
      %p134 = por %p132, %p133
      %s136 = sadd.s32 %s135, 1
      %p139 = scmp.eq.s32.totalorder %s17, 1
      %p140 = scmp.ne.s32.totalorder %s135, %s137
      %p141 = scmp.eq.s32.totalorder %s17, 0
      %p142 = por %p140, %p141
      %p143 = scmp.ne.s32.totalorder %s135, %s137
      %p144 = scmp.eq.s32.totalorder %s22, 1
      %p145 = por %p143, %p144
      %p146 = scmp.ne.s32.totalorder %s137, %s138
      %p147 = scmp.eq.s32.totalorder %s22, 0
      %p148 = por %p146, %p147
      %p149 = scmp.ne.s32.totalorder %s137, %s138
      %p150 = scmp.eq.s32.totalorder %s23, 1
      %p151 = por %p149, %p150
      %p153 = scmp.ne.s32.totalorder %s138, %s152
      %p154 = scmp.eq.s32.totalorder %s23, 0
      %p155 = por %p153, %p154
      %s157 = sadd.s32 %s156, 1
      %p160 = scmp.eq.s32.totalorder %s17, 1
      %p161 = scmp.ne.s32.totalorder %s156, %s158
      %p162 = scmp.eq.s32.totalorder %s17, 0
      %p163 = por %p161, %p162
      %p164 = scmp.ne.s32.totalorder %s156, %s158
      %p165 = scmp.eq.s32.totalorder %s22, 1
      %p166 = por %p164, %p165
      %p167 = scmp.ne.s32.totalorder %s158, %s159
      %p168 = scmp.eq.s32.totalorder %s22, 0
      %p169 = por %p167, %p168
      %p170 = scmp.ne.s32.totalorder %s158, %s159
      %p171 = scmp.eq.s32.totalorder %s23, 1
      %p172 = por %p170, %p171
      %p174 = scmp.ne.s32.totalorder %s159, %s173
      %p175 = scmp.eq.s32.totalorder %s23, 0
      %p176 = por %p174, %p175
      %s178 = sadd.s32 %s177, 1
      %p181 = scmp.eq.s32.totalorder %s17, 1
      %p182 = scmp.ne.s32.totalorder %s177, %s179
      %p183 = scmp.eq.s32.totalorder %s17, 0
      %p184 = por %p182, %p183
      %p185 = scmp.ne.s32.totalorder %s177, %s179
      %p186 = scmp.eq.s32.totalorder %s22, 1
      %p187 = por %p185, %p186
      %p188 = scmp.ne.s32.totalorder %s179, %s180
      %p189 = scmp.eq.s32.totalorder %s22, 0
      %p190 = por %p188, %p189
      %p191 = scmp.ne.s32.totalorder %s179, %s180
      %p192 = scmp.eq.s32.totalorder %s23, 1
      %p193 = por %p191, %p192
      %p195 = scmp.ne.s32.totalorder %s180, %s194
      %p196 = scmp.eq.s32.totalorder %s23, 0
      %p197 = por %p195, %p196
      %s199 = sadd.s32 %s198, 1
      %p202 = scmp.eq.s32.totalorder %s17, 1
      %p203 = scmp.ne.s32.totalorder %s198, %s200
      %p204 = scmp.eq.s32.totalorder %s17, 0
      %p205 = por %p203, %p204
      %p206 = scmp.ne.s32.totalorder %s198, %s200
      %p207 = scmp.eq.s32.totalorder %s22, 1
      %p208 = por %p206, %p207
      %p209 = scmp.ne.s32.totalorder %s200, %s201
      %p210 = scmp.eq.s32.totalorder %s22, 0
      %p211 = por %p209, %p210
      %p212 = scmp.ne.s32.totalorder %s200, %s201
      %p213 = scmp.eq.s32.totalorder %s23, 1
      %p214 = por %p212, %p213
      %p216 = scmp.ne.s32.totalorder %s201, %s215
      %p217 = scmp.eq.s32.totalorder %s23, 0
      %p218 = por %p216, %p217
      %s219 = ssub.s32 %s24, %s36
      %s220 = ssub.s32 %s25, %s32
      %s221 = sor.u32 %s219, %s220
      %p222 = scmp.eq.s32.totalorder %s221, 0
      %s224 = sadd.s32 %s223, 1
      %s225 = scalar_select %p222, %s223, %s224
      %p228 = pneg %p222
      %p229 = scmp.eq.s32.totalorder %s17, 1
      %p230 = por %p228, %p229
      %p231 = scmp.ne.s32.totalorder %s223, %s226
      %p232 = scmp.eq.s32.totalorder %s17, 0
      %p233 = por %p231, %p232
      %p234 = scmp.ne.s32.totalorder %s223, %s226
      %p235 = scmp.eq.s32.totalorder %s22, 1
      %p236 = por %p234, %p235
      %p237 = scmp.ne.s32.totalorder %s226, %s227
      %p238 = scmp.eq.s32.totalorder %s22, 0
      %p239 = por %p237, %p238
      %p240 = scmp.ne.s32.totalorder %s226, %s227
      %p241 = scmp.eq.s32.totalorder %s23, 1
      %p242 = por %p240, %p241
      %p244 = scmp.ne.s32.totalorder %s227, %s243
      %p245 = scmp.eq.s32.totalorder %s23, 0
      %p246 = por %p244, %p245
      %p247 = scmp.le.s32.totalorder 1, %s17
      %p248 = scmp.lt.s32.totalorder %s17, 3
      %p249 = pnand %p247, %p248
      %p250 = pneg %p249
      // Predicated region
      $region9: #{bottleneck_forward.1} parent=5 // pred_check
        _
      $region10: #{bottleneck_forward.1} parent=5 // pred_check_branch
        %252 = sbr.rel (%p249) target = $region12
      $region11: #{bottleneck_forward.1} parent=5 // pred_region
        %s253 = ssub.s32 %s17, 1
        // Predicated region
        $region13: #{bottleneck_forward.1} parent=11 // pred_check
          %p254 = pneg %p106
        $region14: #{bottleneck_forward.1} parent=11 // pred_check_branch
          %256 = sbr.rel (%p254) target = $region16
        $region15: #{bottleneck_forward.1} parent=11 // pred_region
          _
        $region16: #{bottleneck_forward.1} parent=11 // pred_fallthru
          _
        // Predicated region
        $region17: #{bottleneck_forward.1} parent=11 // pred_check
          %p257 = pneg %p127
        $region18: #{bottleneck_forward.1} parent=11 // pred_check_branch
          %259 = sbr.rel (%p257) target = $region20
        $region19: #{bottleneck_forward.1} parent=11 // pred_region
          _
        $region20: #{bottleneck_forward.1} parent=11 // pred_fallthru
          _
        // Predicated region
        $region21: #{bottleneck_forward.1} parent=11 // pred_check
          %p260 = pneg %p148
        $region22: #{bottleneck_forward.1} parent=11 // pred_check_branch
          %262 = sbr.rel (%p260) target = $region24
        $region23: #{bottleneck_forward.1} parent=11 // pred_region
          _
        $region24: #{bottleneck_forward.1} parent=11 // pred_fallthru
          _
        // Predicated region
        $region25: #{bottleneck_forward.1} parent=11 // pred_check
          %p263 = pneg %p169
        $region26: #{bottleneck_forward.1} parent=11 // pred_check_branch
          %265 = sbr.rel (%p263) target = $region28
        $region27: #{bottleneck_forward.1} parent=11 // pred_region
          _
        $region28: #{bottleneck_forward.1} parent=11 // pred_fallthru
          _
        // Predicated region
        $region29: #{bottleneck_forward.1} parent=11 // pred_check
          %p266 = pneg %p190
        $region30: #{bottleneck_forward.1} parent=11 // pred_check_branch
          %268 = sbr.rel (%p266) target = $region32
        $region31: #{bottleneck_forward.1} parent=11 // pred_region
          _
        $region32: #{bottleneck_forward.1} parent=11 // pred_fallthru
          _
        // Predicated region
        $region33: #{bottleneck_forward.1} parent=11 // pred_check
          %p269 = pneg %p211
        $region34: #{bottleneck_forward.1} parent=11 // pred_check_branch
          %271 = sbr.rel (%p269) target = $region36
        $region35: #{bottleneck_forward.1} parent=11 // pred_region
          _
        $region36: #{bottleneck_forward.1} parent=11 // pred_fallthru
          _
      $region12: #{bottleneck_forward.1} parent=5 // pred_fallthru
        _
      %p272 = scmp.lt.s32.totalorder %s17, 2
      // Predicated region
      $region37: #{bottleneck_forward.1} parent=5 // pred_check
        %p273 = pneg %p272
      $region38: #{bottleneck_forward.1} parent=5 // pred_check_branch
        %275 = sbr.rel (%p273) target = $region40
      $region39: #{bottleneck_forward.1} parent=5 // pred_region
        // Predicated region
        $region41: #{bottleneck_forward.1} parent=39 // pred_check
          %p276 = pneg %p51
        $region42: #{bottleneck_forward.1} parent=39 // pred_check_branch
          %278 = sbr.rel (%p276) target = $region44
        $region43: #{bottleneck_forward.1} parent=39 // pred_region
          %s279 = smul.u32 16, %s25
          %p280 = scmp.lt.s32.totalorder %s24, 1
          %s281 = scalar_select %p280, %s24, 1
          %p282 = scmp.lt.s32.totalorder %s279, 15
          %s283 = scalar_select %p282, %s279, 15
          %s284 = smul.addr %s283, 2
          %s285 = smul.addr %s281, 32
          %s286 = sadd.s32 %s284, %s285
          %s287 = smul.addr %s286, 8
          %s288 = scalar_lea.vmem %s0, %s287
          %s289 = smul.u32 16, %s25
        $region44: #{bottleneck_forward.1} parent=39 // pred_fallthru
          _
        // Predicated region
        $region45: #{bottleneck_forward.1} parent=39 // pred_check
          %p290 = pneg %p79
        $region46: #{bottleneck_forward.1} parent=39 // pred_check_branch
          %292 = sbr.rel (%p290) target = $region48
        $region47: #{bottleneck_forward.1} parent=39 // pred_region
          %p293 = scmp.lt.s32.totalorder %s24, 1
          %s294 = scalar_select %p293, %s24, 1
          %p295 = scmp.lt.s32.totalorder %s25, 0
          %s296 = scalar_select %p295, %s25, 0
          %s297 = smul.addr %s296, 4
          %s298 = smul.addr %s294, 4
          %s299 = sadd.s32 %s297, %s298
          %s300 = smul.addr %s299, 8
          %s301 = scalar_lea.vmem %s1, %s300
        $region48: #{bottleneck_forward.1} parent=39 // pred_fallthru
          _
      $region40: #{bottleneck_forward.1} parent=5 // pred_fallthru
        _
      %p302 = scmp.le.s32.totalorder 1, %s17
      %p303 = scmp.lt.s32.totalorder %s17, 3
      %p304 = pnand %p302, %p303
      %p305 = pneg %p304
      // Predicated region
      $region49: #{bottleneck_forward.1} parent=5 // pred_check
        _
      $region50: #{bottleneck_forward.1} parent=5 // pred_check_branch
        %307 = sbr.rel (%p304) target = $region52
      $region51: #{bottleneck_forward.1} parent=5 // pred_region
        %s308 = ssub.s32 %s17, 1
        %s309 = smul.u32 16, %s27
        %p310 = scmp.lt.s32.totalorder %s26, 1
        %s311 = scalar_select %p310, %s26, 1
        %p312 = scmp.lt.s32.totalorder %s309, 15
        %s313 = scalar_select %p312, %s309, 15
        %s314 = smul.addr %s313, 2
        %s315 = smul.addr %s311, 32
        %s316 = sadd.s32 %s314, %s315
        %s317 = smul.addr %s316, 8
        %s318 = scalar_lea.vmem %s0, %s317
        %p319 = pneg %p57
        %p320 = pneg %p54
        %p321 = scmp.lt.s32.totalorder %s26, 1
        %s322 = scalar_select %p321, %s26, 1
        %p323 = scmp.lt.s32.totalorder %s27, 0
        %s324 = scalar_select %p323, %s27, 0
        %s325 = smul.addr %s324, 4
        %s326 = smul.addr %s322, 4
        %s327 = sadd.s32 %s325, %s326
        %s328 = smul.addr %s327, 8
        %s329 = scalar_lea.vmem %s1, %s328
        %p330 = pneg %p85
        %p331 = pneg %p82
        %p332 = pneg %p106
        %p333 = pneg %p103
        %p334 = pneg %p127
        %p335 = pneg %p124
        %p336 = pneg %p148
        %p337 = pneg %p145
        %p338 = pneg %p169
        %p339 = pneg %p166
        %p340 = pneg %p190
        %p341 = pneg %p187
        %p342 = pneg %p211
        %p343 = pneg %p208
        %p344 = pneg %p239
        %p345 = pneg %p236
        %s346 = sand.u32 %s226, 1
        %s347 = scalar_lea.sflag [#allocation3], %s346
        %s348 = sand.u32 %s226, 1
        %s349 = smul.addr %s348, 256
        %s350 = scalar_lea.vmem [#allocation2], %s349
        %s351 = smul.u32 16, %s27
        %p352 = scmp.lt.s32.totalorder %s26, 1
        %s353 = scalar_select %p352, %s26, 1
        %p354 = scmp.lt.s32.totalorder %s351, 15
        %s355 = scalar_select %p354, %s351, 15
        %s356 = smul.addr %s355, 2
        %s357 = smul.addr %s353, 32
        %s358 = sadd.s32 %s356, %s357
        %s359 = smul.addr %s358, 8
        %s360 = scalar_lea.vmem %s0, %s359
        %s361 = smul.u32 16, %s27
        %p362 = scmp.lt.s32.totalorder %s26, 1
        %s363 = scalar_select %p362, %s26, 1
        %p364 = scmp.lt.s32.totalorder %s27, 0
        %s365 = scalar_select %p364, %s27, 0
        %s366 = smul.addr %s365, 4
        %s367 = smul.addr %s363, 4
        %s368 = sadd.s32 %s366, %s367
        %s369 = smul.addr %s368, 8
        %s370 = scalar_lea.vmem %s1, %s369
        %s371 = smul.u32 16, %s27
        %v373 = vld [vmem:[%s360] sm:$0xff]
        %v374 = vld [vmem:[%s360 + $0x8] sm:$0xff]
        %v375 = vld [vmem:[%s360 + $0x10] sm:$0xff]
        %v376 = vld [vmem:[%s360 + $0x18] sm:$0xff]
        %v377 = vld [vmem:[%s360 + $0x20] sm:$0xff]
        %v378 = vld [vmem:[%s360 + $0x28] sm:$0xff]
        %v379 = vld [vmem:[%s360 + $0x30] sm:$0xff]
        %v380 = vld [vmem:[%s360 + $0x38] sm:$0xff]
        %v381 = vld [vmem:[%s360 + $0x40] sm:$0xff]
        %v382 = vld [vmem:[%s360 + $0x48] sm:$0xff]
        %v383 = vld [vmem:[%s360 + $0x50] sm:$0xff]
        %v384 = vld [vmem:[%s360 + $0x58] sm:$0xff]
        %v385 = vld [vmem:[%s360 + $0x60] sm:$0xff]
        %v386 = vld [vmem:[%s360 + $0x68] sm:$0xff]
        %v387 = vld [vmem:[%s360 + $0x70] sm:$0xff]
        %v388 = vld [vmem:[%s360 + $0x78] sm:$0xff]
        %v389 = vld [vmem:[%s360 + $0x80] sm:$0xff]
        %v390 = vld [vmem:[%s360 + $0x88] sm:$0xff]
        %v391 = vld [vmem:[%s360 + $0x90] sm:$0xff]
        %v392 = vld [vmem:[%s360 + $0x98] sm:$0xff]
        %v393 = vld [vmem:[%s360 + $0xa0] sm:$0xff]
        %v394 = vld [vmem:[%s360 + $0xa8] sm:$0xff]
        %v395 = vld [vmem:[%s360 + $0xb0] sm:$0xff]
        %v396 = vld [vmem:[%s360 + $0xb8] sm:$0xff]
        %v397 = vld [vmem:[%s360 + $0xc0] sm:$0xff]
        %v398 = vld [vmem:[%s360 + $0xc8] sm:$0xff]
        %v399 = vld [vmem:[%s360 + $0xd0] sm:$0xff]
        %v400 = vld [vmem:[%s360 + $0xd8] sm:$0xff]
        %v401 = vld [vmem:[%s360 + $0xe0] sm:$0xff]
        %v402 = vld [vmem:[%s360 + $0xe8] sm:$0xff]
        %v403 = vld [vmem:[%s360 + $0xf0] sm:$0xff]
        %v404 = vld [vmem:[%s360 + $0xf8] sm:$0xff]
        %v405 = vld [vmem:[%s370] sm:$0xff]
        %v406 = vld [vmem:[%s370 + $0x8] sm:$0xff]
        %v407 = vld [vmem:[%s370 + $0x10] sm:$0xff]
        %v408 = vld [vmem:[%s370 + $0x18] sm:$0xff]
        %v409 = vpack.c.bf16 %v374, %v373
        %v410 = vpack.c.bf16 %v376, %v375
        %v411 = vpack.c.bf16 %v378, %v377
        %v412 = vpack.c.bf16 %v380, %v379
        %v413 = vpack.c.bf16 %v382, %v381
        %v414 = vpack.c.bf16 %v384, %v383
        %v415 = vpack.c.bf16 %v386, %v385
        %v416 = vpack.c.bf16 %v388, %v387
        %v417 = vpack.c.bf16 %v390, %v389
        %v418 = vpack.c.bf16 %v392, %v391
        %v419 = vpack.c.bf16 %v394, %v393
        %v420 = vpack.c.bf16 %v396, %v395
        %v421 = vpack.c.bf16 %v398, %v397
        %v422 = vpack.c.bf16 %v400, %v399
        %v423 = vpack.c.bf16 %v402, %v401
        %v424 = vpack.c.bf16 %v404, %v403
        %v425 = vpack.c.bf16 %v406, %v405
        %v426 = vpack.c.bf16 %v408, %v407
        %v427 = vld [vmem:[%s2] sm:$0xf]
        %v428 = vld [vmem:[%s2 + $0x4] sm:$0xf]
        %v429 = vld [vmem:[%s2 + $0x8] sm:$0xf]
        %v430 = vld [vmem:[%s2 + $0xc] sm:$0xf]
        %v431 = vld [vmem:[%s2 + $0x10] sm:$0xf]
        %v432 = vld [vmem:[%s2 + $0x14] sm:$0xf]
        %v433 = vld [vmem:[%s2 + $0x18] sm:$0xf]
        %v434 = vld [vmem:[%s2 + $0x1c] sm:$0xf]
        %v435 = vld [vmem:[%s2 + $0x20] sm:$0xf]
        %v436 = vld [vmem:[%s2 + $0x24] sm:$0xf]
        %v437 = vld [vmem:[%s2 + $0x28] sm:$0xf]
        %v438 = vld [vmem:[%s2 + $0x2c] sm:$0xf]
        %v439 = vld [vmem:[%s2 + $0x30] sm:$0xf]
        %v440 = vld [vmem:[%s2 + $0x34] sm:$0xf]
        %v441 = vld [vmem:[%s2 + $0x38] sm:$0xf]
        %v442 = vld [vmem:[%s2 + $0x3c] sm:$0xf]
        %v443 = vld [vmem:[%s3] sm:$0x1]
        %v445 = vlaneseq
        %v446 = vshrl.u32 %v445, 7
        %v447 = vsub.s32 0, %v446
        %v448 = vrot.slane %v443, %v447
        %v466 = vunpack.c.l.b16 %v427
        %v467 = vunpack.c.l.b16 %v428
        %v468 = vunpack.c.l.b16 %v429
        %v469 = vunpack.c.l.b16 %v430
        %v470 = vunpack.c.l.b16 %v431
        %v471 = vunpack.c.l.b16 %v432
        %v472 = vunpack.c.l.b16 %v433
        %v473 = vunpack.c.l.b16 %v434
        %v474 = vunpack.c.l.b16 %v435
        %v475 = vunpack.c.l.b16 %v436
        %v476 = vunpack.c.l.b16 %v437
        %v477 = vunpack.c.l.b16 %v438
        %v478 = vunpack.c.l.b16 %v439
        %v479 = vunpack.c.l.b16 %v440
        %v480 = vunpack.c.l.b16 %v441
        %v481 = vunpack.c.l.b16 %v442
        %v482 = vpack.c.b16 %v467, %v466
        %v483 = vpack.c.b16 %v469, %v468
        %v484 = vpack.c.b16 %v471, %v470
        %v485 = vpack.c.b16 %v473, %v472
        %v486 = vpack.c.b16 %v475, %v474
        %v487 = vpack.c.b16 %v477, %v476
        %v488 = vpack.c.b16 %v479, %v478
        %v489 = vpack.c.b16 %v481, %v480
        %498 = vmatprep.subr.bf16.mxu0 0
        %499 = vmatpush1.bf16.msra.mxu0 %v489
        %500 = vmatprep.subr.bf16.mxu0 0
        %501 = vmatpush1.bf16.msra.mxu0 %v488
        %502 = vmatprep.subr.bf16.mxu0 0
        %503 = vmatpush1.bf16.msra.mxu0 %v487
        %504 = vmatprep.subr.bf16.mxu0 0
        %505 = vmatpush1.bf16.msra.mxu0 %v486
        %506 = vmatprep.subr.bf16.mxu0 0
        %507 = vmatpush1.bf16.msra.mxu0 %v485
        %508 = vmatprep.subr.bf16.mxu0 0
        %509 = vmatpush1.bf16.msra.mxu0 %v484
        %510 = vmatprep.subr.bf16.mxu0 0
        %511 = vmatpush1.bf16.msra.mxu0 %v483
        %512 = vmatprep.subr.bf16.mxu0 0
        %513 = vmatpush1.bf16.msra.mxu0 %v482
        %514 = vmatprep.subr.bf16.mxu0 0
        %515 = vmatpush2.bf16.msra.mxu0 0
        %516 = vmatprep.subr.bf16.mxu0 0
        %517 = vmatpush2.bf16.msra.mxu0 0
        %518 = vmatprep.subr.bf16.mxu0 0
        %519 = vmatpush2.bf16.msra.mxu0 0
        %520 = vmatprep.subr.bf16.mxu0 0
        %521 = vmatpush2.bf16.msra.mxu0 0
        %522 = vmatprep.subr.bf16.mxu0 0
        %523 = vmatpush2.bf16.msra.mxu0 0
        %524 = vmatprep.subr.bf16.mxu0 0
        %525 = vmatpush2.bf16.msra.mxu0 0
        %526 = vmatprep.subr.bf16.mxu0 0
        %527 = vmatpush2.bf16.msra.mxu0 0
        %528 = vmatprep.subr.bf16.mxu0 0
        %529 = vmatpush2.bf16.msra.mxu0 0
        %530 = vmatprep.mubr.bf16.mxu0 0
        %531 = vmatmul.mubr.bf16.gmra.mxu0 %v409
        %v532 = vpop.f32.mrf.mxu0
        %v533 = vadd.f32 %v448, %v532
        %v534 = vpop.f32.mrf.mxu0
        %v535 = vpop.f32.mrf.mxu0
        %v536 = vadd.f32 %v448, %v535
        %v537 = vpop.f32.mrf.mxu0
        %538 = vmatprep.mubr.bf16.mxu0 0
        %539 = vmatmul.mubr.bf16.gmra.mxu0 %v410
        %v540 = vpop.f32.mrf.mxu0
        %v541 = vadd.f32 %v448, %v540
        %v542 = vpop.f32.mrf.mxu0
        %v543 = vpop.f32.mrf.mxu0
        %v544 = vadd.f32 %v448, %v543
        %v545 = vpop.f32.mrf.mxu0
        %546 = vmatprep.mubr.bf16.mxu0 0
        %547 = vmatmul.mubr.bf16.gmra.mxu0 %v411
        %v548 = vpop.f32.mrf.mxu0
        %v549 = vadd.f32 %v448, %v548
        %v550 = vpop.f32.mrf.mxu0
        %v551 = vpop.f32.mrf.mxu0
        %v552 = vadd.f32 %v448, %v551
        %v553 = vpop.f32.mrf.mxu0
        %554 = vmatprep.mubr.bf16.mxu0 0
        %555 = vmatmul.mubr.bf16.gmra.mxu0 %v412
        %v556 = vpop.f32.mrf.mxu0
        %v557 = vadd.f32 %v448, %v556
        %v558 = vpop.f32.mrf.mxu0
        %v559 = vpop.f32.mrf.mxu0
        %v560 = vadd.f32 %v448, %v559
        %v561 = vpop.f32.mrf.mxu0
        %562 = vmatprep.mubr.bf16.mxu0 0
        %563 = vmatmul.mubr.bf16.gmra.mxu0 %v413
        %v564 = vpop.f32.mrf.mxu0
        %v565 = vadd.f32 %v448, %v564
        %v566 = vpop.f32.mrf.mxu0
        %v567 = vpop.f32.mrf.mxu0
        %v568 = vadd.f32 %v448, %v567
        %v569 = vpop.f32.mrf.mxu0
        %570 = vmatprep.mubr.bf16.mxu0 0
        %571 = vmatmul.mubr.bf16.gmra.mxu0 %v414
        %v572 = vpop.f32.mrf.mxu0
        %v573 = vadd.f32 %v448, %v572
        %v574 = vpop.f32.mrf.mxu0
        %v575 = vpop.f32.mrf.mxu0
        %v576 = vadd.f32 %v448, %v575
        %v577 = vpop.f32.mrf.mxu0
        %578 = vmatprep.mubr.bf16.mxu0 0
        %579 = vmatmul.mubr.bf16.gmra.mxu0 %v415
        %v580 = vpop.f32.mrf.mxu0
        %v581 = vadd.f32 %v448, %v580
        %v582 = vpop.f32.mrf.mxu0
        %v583 = vpop.f32.mrf.mxu0
        %v584 = vadd.f32 %v448, %v583
        %v585 = vpop.f32.mrf.mxu0
        %586 = vmatprep.mubr.bf16.mxu0 0
        %587 = vmatmul.mubr.bf16.gmra.mxu0 %v416
        %v588 = vpop.f32.mrf.mxu0
        %v589 = vadd.f32 %v448, %v588
        %v590 = vpop.f32.mrf.mxu0
        %v591 = vpop.f32.mrf.mxu0
        %v592 = vadd.f32 %v448, %v591
        %v593 = vpop.f32.mrf.mxu0
        %594 = vmatprep.mubr.bf16.mxu0 0
        %595 = vmatmul.mubr.bf16.gmra.mxu0 %v417
        %v596 = vpop.f32.mrf.mxu0
        %v597 = vadd.f32 %v448, %v596
        %v598 = vpop.f32.mrf.mxu0
        %v599 = vpop.f32.mrf.mxu0
        %v600 = vadd.f32 %v448, %v599
        %v601 = vpop.f32.mrf.mxu0
        %602 = vmatprep.mubr.bf16.mxu0 0
        %603 = vmatmul.mubr.bf16.gmra.mxu0 %v418
        %v604 = vpop.f32.mrf.mxu0
        %v605 = vadd.f32 %v448, %v604
        %v606 = vpop.f32.mrf.mxu0
        %v607 = vpop.f32.mrf.mxu0
        %v608 = vadd.f32 %v448, %v607
        %v609 = vpop.f32.mrf.mxu0
        %610 = vmatprep.mubr.bf16.mxu0 0
        %611 = vmatmul.mubr.bf16.gmra.mxu0 %v419
        %v612 = vpop.f32.mrf.mxu0
        %v613 = vadd.f32 %v448, %v612
        %v614 = vpop.f32.mrf.mxu0
        %v615 = vpop.f32.mrf.mxu0
        %v616 = vadd.f32 %v448, %v615
        %v617 = vpop.f32.mrf.mxu0
        %618 = vmatprep.mubr.bf16.mxu0 0
        %619 = vmatmul.mubr.bf16.gmra.mxu0 %v420
        %v620 = vpop.f32.mrf.mxu0
        %v621 = vadd.f32 %v448, %v620
        %v622 = vpop.f32.mrf.mxu0
        %v623 = vpop.f32.mrf.mxu0
        %v624 = vadd.f32 %v448, %v623
        %v625 = vpop.f32.mrf.mxu0
        %626 = vmatprep.mubr.bf16.mxu0 0
        %627 = vmatmul.mubr.bf16.gmra.mxu0 %v421
        %v628 = vpop.f32.mrf.mxu0
        %v629 = vadd.f32 %v448, %v628
        %v630 = vpop.f32.mrf.mxu0
        %v631 = vpop.f32.mrf.mxu0
        %v632 = vadd.f32 %v448, %v631
        %v633 = vpop.f32.mrf.mxu0
        %634 = vmatprep.mubr.bf16.mxu0 0
        %635 = vmatmul.mubr.bf16.gmra.mxu0 %v422
        %v636 = vpop.f32.mrf.mxu0
        %v637 = vadd.f32 %v448, %v636
        %v638 = vpop.f32.mrf.mxu0
        %v639 = vpop.f32.mrf.mxu0
        %v640 = vadd.f32 %v448, %v639
        %v641 = vpop.f32.mrf.mxu0
        %642 = vmatprep.mubr.bf16.mxu0 0
        %643 = vmatmul.mubr.bf16.gmra.mxu0 %v423
        %v644 = vpop.f32.mrf.mxu0
        %v645 = vadd.f32 %v448, %v644
        %v646 = vpop.f32.mrf.mxu0
        %v647 = vpop.f32.mrf.mxu0
        %v648 = vadd.f32 %v448, %v647
        %v649 = vpop.f32.mrf.mxu0
        %650 = vmatprep.mubr.bf16.mxu0 0
        %651 = vmatmul.mubr.bf16.gmra.mxu0 %v424
        %v652 = vpop.f32.mrf.mxu0
        %v653 = vadd.f32 %v448, %v652
        %v654 = vpop.f32.mrf.mxu0
        %v655 = vpop.f32.mrf.mxu0
        %v656 = vadd.f32 %v448, %v655
        %v657 = vpop.f32.mrf.mxu0
        %658 = vmatprep.mubr.bf16.mxu0 0
        %659 = vmatmul.mubr.bf16.gmra.mxu0 %v425
        %v660 = vpop.f32.mrf.mxu0
        %v661 = vadd.f32 %v448, %v660
        %v662 = vpop.f32.mrf.mxu0
        %v663 = vpop.f32.mrf.mxu0
        %v664 = vadd.f32 %v448, %v663
        %v665 = vpop.f32.mrf.mxu0
        %666 = vmatprep.mubr.bf16.mxu0 0
        %667 = vmatmul.mubr.bf16.gmra.mxu0 %v426
        %v668 = vpop.f32.mrf.mxu0
        %v669 = vadd.f32 %v448, %v668
        %v670 = vpop.f32.mrf.mxu0
        %v671 = vpop.f32.mrf.mxu0
        %v672 = vadd.f32 %v448, %v671
        %v673 = vpop.f32.mrf.mxu0
        %674 = vdwg.mxu0
        %v675 = vmax.f32 %v533, 0.0
        %v676 = vmax.f32 %v536, 0.0
        %v677 = vmax.f32 %v541, 0.0
        %v678 = vmax.f32 %v544, 0.0
        %v679 = vmax.f32 %v549, 0.0
        %v680 = vmax.f32 %v552, 0.0
        %v681 = vmax.f32 %v557, 0.0
        %v682 = vmax.f32 %v560, 0.0
        %v683 = vmax.f32 %v565, 0.0
        %v684 = vmax.f32 %v568, 0.0
        %v685 = vmax.f32 %v573, 0.0
        %v686 = vmax.f32 %v576, 0.0
        %v687 = vmax.f32 %v581, 0.0
        %v688 = vmax.f32 %v584, 0.0
        %v689 = vmax.f32 %v589, 0.0
        %v690 = vmax.f32 %v592, 0.0
        %v691 = vmax.f32 %v597, 0.0
        %v692 = vmax.f32 %v600, 0.0
        %v693 = vmax.f32 %v605, 0.0
        %v694 = vmax.f32 %v608, 0.0
        %v695 = vmax.f32 %v613, 0.0
        %v696 = vmax.f32 %v616, 0.0
        %v697 = vmax.f32 %v621, 0.0
        %v698 = vmax.f32 %v624, 0.0
        %v699 = vmax.f32 %v629, 0.0
        %v700 = vmax.f32 %v632, 0.0
        %v701 = vmax.f32 %v637, 0.0
        %v702 = vmax.f32 %v640, 0.0
        %v703 = vmax.f32 %v645, 0.0
        %v704 = vmax.f32 %v648, 0.0
        %v705 = vmax.f32 %v653, 0.0
        %v706 = vmax.f32 %v656, 0.0
        %v707 = vmax.f32 %v661, 0.0
        %v708 = vmax.f32 %v664, 0.0
        %v709 = vmax.f32 %v669, 0.0
        %v710 = vmax.f32 %v672, 0.0
        %v711 = vpack.c.bf16 %v676, %v675
        %v712 = vpack.c.bf16 %v678, %v677
        %v713 = vpack.c.bf16 %v680, %v679
        %v714 = vpack.c.bf16 %v682, %v681
        %v715 = vpack.c.bf16 %v684, %v683
        %v716 = vpack.c.bf16 %v686, %v685
        %v717 = vpack.c.bf16 %v688, %v687
        %v718 = vpack.c.bf16 %v690, %v689
        %v719 = vpack.c.bf16 %v692, %v691
        %v720 = vpack.c.bf16 %v694, %v693
        %v721 = vpack.c.bf16 %v696, %v695
        %v722 = vpack.c.bf16 %v698, %v697
        %v723 = vpack.c.bf16 %v700, %v699
        %v724 = vpack.c.bf16 %v702, %v701
        %v725 = vpack.c.bf16 %v704, %v703
        %v726 = vpack.c.bf16 %v706, %v705
        %v727 = vpack.c.bf16 %v708, %v707
        %v728 = vpack.c.bf16 %v710, %v709
        %p729 = scmp.gt.s32.totalorder %s27, 0
        %s730 = scalar_select %p729, 1, 0
        %v731 = vstv %s730
        %vm732 = vcmp.eq.s32.totalorder %v731, 1
        %v733 = vsel %vm732, %v727, 0
        %p734 = scmp.lt.s32.totalorder %s27, 0
        %s735 = scalar_select %p734, 1, 0
        %v736 = vstv %s735
        %vm737 = vcmp.eq.s32.totalorder %v736, 1
        %v738 = vsel %vm737, %v728, 0
        %v740 = vshrl.u32 %v733, 16
        %v742 = vrot.slane %v740, 7
        %v743 = vshll.u32 %v733, 16
        %v745 = vor.u32 %v742, %v743
        %v747 = vshrl.u32 %v711, 16
        %v749 = vrot.slane %v747, 7
        %v750 = vshll.u32 %v711, 16
        %v752 = vor.u32 %v749, %v750
        %v754 = vshrl.u32 %v712, 16
        %v756 = vrot.slane %v754, 7
        %v757 = vshll.u32 %v712, 16
        %v759 = vor.u32 %v756, %v757
        %v761 = vshrl.u32 %v713, 16
        %v763 = vrot.slane %v761, 7
        %v764 = vshll.u32 %v713, 16
        %v766 = vor.u32 %v763, %v764
        %v768 = vshrl.u32 %v714, 16
        %v770 = vrot.slane %v768, 7
        %v771 = vshll.u32 %v714, 16
        %v773 = vor.u32 %v770, %v771
        %v775 = vshrl.u32 %v715, 16
        %v777 = vrot.slane %v775, 7
        %v778 = vshll.u32 %v715, 16
        %v780 = vor.u32 %v777, %v778
        %v782 = vshrl.u32 %v716, 16
        %v784 = vrot.slane %v782, 7
        %v785 = vshll.u32 %v716, 16
        %v787 = vor.u32 %v784, %v785
        %v789 = vshrl.u32 %v717, 16
        %v791 = vrot.slane %v789, 7
        %v792 = vshll.u32 %v717, 16
        %v794 = vor.u32 %v791, %v792
        %v796 = vshrl.u32 %v718, 16
        %v798 = vrot.slane %v796, 7
        %v799 = vshll.u32 %v718, 16
        %v801 = vor.u32 %v798, %v799
        %v803 = vshrl.u32 %v719, 16
        %v805 = vrot.slane %v803, 7
        %v806 = vshll.u32 %v719, 16
        %v808 = vor.u32 %v805, %v806
        %v810 = vshrl.u32 %v720, 16
        %v812 = vrot.slane %v810, 7
        %v813 = vshll.u32 %v720, 16
        %v815 = vor.u32 %v812, %v813
        %v817 = vshrl.u32 %v721, 16
        %v819 = vrot.slane %v817, 7
        %v820 = vshll.u32 %v721, 16
        %v822 = vor.u32 %v819, %v820
        %v824 = vshrl.u32 %v722, 16
        %v826 = vrot.slane %v824, 7
        %v827 = vshll.u32 %v722, 16
        %v829 = vor.u32 %v826, %v827
        %v831 = vshrl.u32 %v723, 16
        %v833 = vrot.slane %v831, 7
        %v834 = vshll.u32 %v723, 16
        %v836 = vor.u32 %v833, %v834
        %v838 = vshrl.u32 %v724, 16
        %v840 = vrot.slane %v838, 7
        %v841 = vshll.u32 %v724, 16
        %v843 = vor.u32 %v840, %v841
        %v845 = vshrl.u32 %v725, 16
        %v847 = vrot.slane %v845, 7
        %v848 = vshll.u32 %v725, 16
        %v850 = vor.u32 %v847, %v848
        %v852 = vshrl.u32 %v726, 16
        %v854 = vrot.slane %v852, 7
        %v855 = vshll.u32 %v726, 16
        %v857 = vor.u32 %v854, %v855
        %v859 = vshrl.u32 %v738, 16
        %v861 = vrot.slane %v859, 7
        %v862 = vshll.u32 %v738, 16
        %v864 = vor.u32 %v861, %v862
        %vm901 = vcmask 1040384
        %vm902 = vsmask.f32 256
        %vm903 = vmand %vm901, %vm902
        %v904 = vsel %vm903, 0, %v745
        %v905 = vsel %vm903, 0, %v752
        %v906 = vsel %vm903, 0, %v759
        %v907 = vsel %vm903, 0, %v766
        %v908 = vsel %vm903, 0, %v773
        %v909 = vsel %vm903, 0, %v780
        %v910 = vsel %vm903, 0, %v787
        %v911 = vsel %vm903, 0, %v794
        %v912 = vsel %vm903, 0, %v801
        %v913 = vsel %vm903, 0, %v808
        %v914 = vsel %vm903, 0, %v815
        %v915 = vsel %vm903, 0, %v822
        %v916 = vsel %vm903, 0, %v829
        %v917 = vsel %vm903, 0, %v836
        %v918 = vsel %vm903, 0, %v843
        %v919 = vsel %vm903, 0, %v850
        %v920 = vsel %vm903, 0, %v857
        %v921 = vsel %vm903, 0, %v864
        %v922 = vsel %vm903, %v742, 0
        %v923 = vsel %vm903, %v749, 0
        %v924 = vsel %vm903, %v756, 0
        %v925 = vsel %vm903, %v763, 0
        %v926 = vsel %vm903, %v770, 0
        %v927 = vsel %vm903, %v777, 0
        %v928 = vsel %vm903, %v784, 0
        %v929 = vsel %vm903, %v791, 0
        %v930 = vsel %vm903, %v798, 0
        %v931 = vsel %vm903, %v805, 0
        %v932 = vsel %vm903, %v812, 0
        %v933 = vsel %vm903, %v819, 0
        %v934 = vsel %vm903, %v826, 0
        %v935 = vsel %vm903, %v833, 0
        %v936 = vsel %vm903, %v840, 0
        %v937 = vsel %vm903, %v847, 0
        %v938 = vsel %vm903, %v854, 0
        %v939 = vsel %vm903, %v861, 0
        %vm940 = vsmask.f32 7424
        %v942 = vshrl.u32 %v904, 16
        %v944 = vshll.u32 %v904, 16
        %v946 = vrot.slane %v944, 1
        %v947 = vor.u32 %v942, %v946
        %v949 = vshll.u32 %v922, 16
        %v951 = vrot.slane %v949, 1
        %v952 = vsel %vm940, %v947, %v951
        %v954 = vshrl.u32 %v905, 16
        %v956 = vshll.u32 %v905, 16
        %v958 = vrot.slane %v956, 1
        %v959 = vor.u32 %v954, %v958
        %v961 = vshll.u32 %v923, 16
        %v963 = vrot.slane %v961, 1
        %v964 = vsel %vm940, %v959, %v963
        %v966 = vshrl.u32 %v906, 16
        %v968 = vshll.u32 %v906, 16
        %v970 = vrot.slane %v968, 1
        %v971 = vor.u32 %v966, %v970
        %v973 = vshll.u32 %v924, 16
        %v975 = vrot.slane %v973, 1
        %v976 = vsel %vm940, %v971, %v975
        %v978 = vshrl.u32 %v907, 16
        %v980 = vshll.u32 %v907, 16
        %v982 = vrot.slane %v980, 1
        %v983 = vor.u32 %v978, %v982
        %v985 = vshll.u32 %v925, 16
        %v987 = vrot.slane %v985, 1
        %v988 = vsel %vm940, %v983, %v987
        %v990 = vshrl.u32 %v908, 16
        %v992 = vshll.u32 %v908, 16
        %v994 = vrot.slane %v992, 1
        %v995 = vor.u32 %v990, %v994
        %v997 = vshll.u32 %v926, 16
        %v999 = vrot.slane %v997, 1
        %v1000 = vsel %vm940, %v995, %v999
        %v1002 = vshrl.u32 %v909, 16
        %v1004 = vshll.u32 %v909, 16
        %v1006 = vrot.slane %v1004, 1
        %v1007 = vor.u32 %v1002, %v1006
        %v1009 = vshll.u32 %v927, 16
        %v1011 = vrot.slane %v1009, 1
        %v1012 = vsel %vm940, %v1007, %v1011
        %v1014 = vshrl.u32 %v910, 16
        %v1016 = vshll.u32 %v910, 16
        %v1018 = vrot.slane %v1016, 1
        %v1019 = vor.u32 %v1014, %v1018
        %v1021 = vshll.u32 %v928, 16
        %v1023 = vrot.slane %v1021, 1
        %v1024 = vsel %vm940, %v1019, %v1023
        %v1026 = vshrl.u32 %v911, 16
        %v1028 = vshll.u32 %v911, 16
        %v1030 = vrot.slane %v1028, 1
        %v1031 = vor.u32 %v1026, %v1030
        %v1033 = vshll.u32 %v929, 16
        %v1035 = vrot.slane %v1033, 1
        %v1036 = vsel %vm940, %v1031, %v1035
        %v1038 = vshrl.u32 %v912, 16
        %v1040 = vshll.u32 %v912, 16
        %v1042 = vrot.slane %v1040, 1
        %v1043 = vor.u32 %v1038, %v1042
        %v1045 = vshll.u32 %v930, 16
        %v1047 = vrot.slane %v1045, 1
        %v1048 = vsel %vm940, %v1043, %v1047
        %v1050 = vshrl.u32 %v913, 16
        %v1052 = vshll.u32 %v913, 16
        %v1054 = vrot.slane %v1052, 1
        %v1055 = vor.u32 %v1050, %v1054
        %v1057 = vshll.u32 %v931, 16
        %v1059 = vrot.slane %v1057, 1
        %v1060 = vsel %vm940, %v1055, %v1059
        %v1062 = vshrl.u32 %v914, 16
        %v1064 = vshll.u32 %v914, 16
        %v1066 = vrot.slane %v1064, 1
        %v1067 = vor.u32 %v1062, %v1066
        %v1069 = vshll.u32 %v932, 16
        %v1071 = vrot.slane %v1069, 1
        %v1072 = vsel %vm940, %v1067, %v1071
        %v1074 = vshrl.u32 %v915, 16
        %v1076 = vshll.u32 %v915, 16
        %v1078 = vrot.slane %v1076, 1
        %v1079 = vor.u32 %v1074, %v1078
        %v1081 = vshll.u32 %v933, 16
        %v1083 = vrot.slane %v1081, 1
        %v1084 = vsel %vm940, %v1079, %v1083
        %v1086 = vshrl.u32 %v916, 16
        %v1088 = vshll.u32 %v916, 16
        %v1090 = vrot.slane %v1088, 1
        %v1091 = vor.u32 %v1086, %v1090
        %v1093 = vshll.u32 %v934, 16
        %v1095 = vrot.slane %v1093, 1
        %v1096 = vsel %vm940, %v1091, %v1095
        %v1098 = vshrl.u32 %v917, 16
        %v1100 = vshll.u32 %v917, 16
        %v1102 = vrot.slane %v1100, 1
        %v1103 = vor.u32 %v1098, %v1102
        %v1105 = vshll.u32 %v935, 16
        %v1107 = vrot.slane %v1105, 1
        %v1108 = vsel %vm940, %v1103, %v1107
        %v1110 = vshrl.u32 %v918, 16
        %v1112 = vshll.u32 %v918, 16
        %v1114 = vrot.slane %v1112, 1
        %v1115 = vor.u32 %v1110, %v1114
        %v1117 = vshll.u32 %v936, 16
        %v1119 = vrot.slane %v1117, 1
        %v1120 = vsel %vm940, %v1115, %v1119
        %v1122 = vshrl.u32 %v919, 16
        %v1124 = vshll.u32 %v919, 16
        %v1126 = vrot.slane %v1124, 1
        %v1127 = vor.u32 %v1122, %v1126
        %v1129 = vshll.u32 %v937, 16
        %v1131 = vrot.slane %v1129, 1
        %v1132 = vsel %vm940, %v1127, %v1131
        %1133 = vrot.lane.b32.xlu0 %v952, 32
        %v1134 = vpop.permute.xlu0 %1133
        %1135 = vrot.lane.b32.xlu0 %v964, 32
        %v1136 = vpop.permute.xlu0 %1135
        %1137 = vrot.lane.b32.xlu0 %v976, 32
        %v1138 = vpop.permute.xlu0 %1137
        %1139 = vrot.lane.b32.xlu0 %v988, 32
        %v1140 = vpop.permute.xlu0 %1139
        %1141 = vrot.lane.b32.xlu0 %v1000, 32
        %v1142 = vpop.permute.xlu0 %1141
        %1143 = vrot.lane.b32.xlu0 %v1012, 32
        %v1144 = vpop.permute.xlu0 %1143
        %1145 = vrot.lane.b32.xlu0 %v1024, 32
        %v1146 = vpop.permute.xlu0 %1145
        %1147 = vrot.lane.b32.xlu0 %v1036, 32
        %v1148 = vpop.permute.xlu0 %1147
        %1149 = vrot.lane.b32.xlu0 %v1048, 32
        %v1150 = vpop.permute.xlu0 %1149
        %1151 = vrot.lane.b32.xlu0 %v1060, 32
        %v1152 = vpop.permute.xlu0 %1151
        %1153 = vrot.lane.b32.xlu0 %v1072, 32
        %v1154 = vpop.permute.xlu0 %1153
        %1155 = vrot.lane.b32.xlu0 %v1084, 32
        %v1156 = vpop.permute.xlu0 %1155
        %1157 = vrot.lane.b32.xlu0 %v1096, 32
        %v1158 = vpop.permute.xlu0 %1157
        %1159 = vrot.lane.b32.xlu0 %v1108, 32
        %v1160 = vpop.permute.xlu0 %1159
        %1161 = vrot.lane.b32.xlu0 %v1120, 32
        %v1162 = vpop.permute.xlu0 %1161
        %1163 = vrot.lane.b32.xlu0 %v1132, 32
        %v1164 = vpop.permute.xlu0 %1163
        %vm1197 = vcmask 1046528
        %v1198 = vrot.slane %v904, 1
        %v1199 = vrot.slane %v922, 1
        %v1200 = vsel %vm1197, %v1198, %v1199
        %v1201 = vrot.slane %v905, 1
        %v1202 = vrot.slane %v923, 1
        %v1203 = vsel %vm1197, %v1201, %v1202
        %v1204 = vrot.slane %v906, 1
        %v1205 = vrot.slane %v924, 1
        %v1206 = vsel %vm1197, %v1204, %v1205
        %v1207 = vrot.slane %v907, 1
        %v1208 = vrot.slane %v925, 1
        %v1209 = vsel %vm1197, %v1207, %v1208
        %v1210 = vrot.slane %v908, 1
        %v1211 = vrot.slane %v926, 1
        %v1212 = vsel %vm1197, %v1210, %v1211
        %v1213 = vrot.slane %v909, 1
        %v1214 = vrot.slane %v927, 1
        %v1215 = vsel %vm1197, %v1213, %v1214
        %v1216 = vrot.slane %v910, 1
        %v1217 = vrot.slane %v928, 1
        %v1218 = vsel %vm1197, %v1216, %v1217
        %v1219 = vrot.slane %v911, 1
        %v1220 = vrot.slane %v929, 1
        %v1221 = vsel %vm1197, %v1219, %v1220
        %v1222 = vrot.slane %v912, 1
        %v1223 = vrot.slane %v930, 1
        %v1224 = vsel %vm1197, %v1222, %v1223
        %v1225 = vrot.slane %v913, 1
        %v1226 = vrot.slane %v931, 1
        %v1227 = vsel %vm1197, %v1225, %v1226
        %v1228 = vrot.slane %v914, 1
        %v1229 = vrot.slane %v932, 1
        %v1230 = vsel %vm1197, %v1228, %v1229
        %v1231 = vrot.slane %v915, 1
        %v1232 = vrot.slane %v933, 1
        %v1233 = vsel %vm1197, %v1231, %v1232
        %v1234 = vrot.slane %v916, 1
        %v1235 = vrot.slane %v934, 1
        %v1236 = vsel %vm1197, %v1234, %v1235
        %v1237 = vrot.slane %v917, 1
        %v1238 = vrot.slane %v935, 1
        %v1239 = vsel %vm1197, %v1237, %v1238
        %v1240 = vrot.slane %v918, 1
        %v1241 = vrot.slane %v936, 1
        %v1242 = vsel %vm1197, %v1240, %v1241
        %v1243 = vrot.slane %v919, 1
        %v1244 = vrot.slane %v937, 1
        %v1245 = vsel %vm1197, %v1243, %v1244
        %1246 = vrot.lane.b32.xlu0 %v1200, 64
        %v1247 = vpop.permute.xlu0 %1246
        %1248 = vrot.lane.b32.xlu0 %v1203, 64
        %v1249 = vpop.permute.xlu0 %1248
        %1250 = vrot.lane.b32.xlu0 %v1206, 64
        %v1251 = vpop.permute.xlu0 %1250
        %1252 = vrot.lane.b32.xlu0 %v1209, 64
        %v1253 = vpop.permute.xlu0 %1252
        %1254 = vrot.lane.b32.xlu0 %v1212, 64
        %v1255 = vpop.permute.xlu0 %1254
        %1256 = vrot.lane.b32.xlu0 %v1215, 64
        %v1257 = vpop.permute.xlu0 %1256
        %1258 = vrot.lane.b32.xlu0 %v1218, 64
        %v1259 = vpop.permute.xlu0 %1258
        %1260 = vrot.lane.b32.xlu0 %v1221, 64
        %v1261 = vpop.permute.xlu0 %1260
        %1262 = vrot.lane.b32.xlu0 %v1224, 64
        %v1263 = vpop.permute.xlu0 %1262
        %1264 = vrot.lane.b32.xlu0 %v1227, 64
        %v1265 = vpop.permute.xlu0 %1264
        %1266 = vrot.lane.b32.xlu0 %v1230, 64
        %v1267 = vpop.permute.xlu0 %1266
        %1268 = vrot.lane.b32.xlu0 %v1233, 64
        %v1269 = vpop.permute.xlu0 %1268
        %1270 = vrot.lane.b32.xlu0 %v1236, 64
        %v1271 = vpop.permute.xlu0 %1270
        %1272 = vrot.lane.b32.xlu0 %v1239, 64
        %v1273 = vpop.permute.xlu0 %1272
        %1274 = vrot.lane.b32.xlu0 %v1242, 64
        %v1275 = vpop.permute.xlu0 %1274
        %1276 = vrot.lane.b32.xlu0 %v1245, 64
        %v1277 = vpop.permute.xlu0 %1276
        %1279 = vrot.lane.b32.xlu0 %v905, 96
        %v1280 = vpop.permute.xlu0 %1279
        %1281 = vrot.lane.b32.xlu0 %v906, 96
        %v1282 = vpop.permute.xlu0 %1281
        %1283 = vrot.lane.b32.xlu0 %v907, 96
        %v1284 = vpop.permute.xlu0 %1283
        %1285 = vrot.lane.b32.xlu0 %v908, 96
        %v1286 = vpop.permute.xlu0 %1285
        %1287 = vrot.lane.b32.xlu0 %v909, 96
        %v1288 = vpop.permute.xlu0 %1287
        %1289 = vrot.lane.b32.xlu0 %v910, 96
        %v1290 = vpop.permute.xlu0 %1289
        %1291 = vrot.lane.b32.xlu0 %v911, 96
        %v1292 = vpop.permute.xlu0 %1291
        %1293 = vrot.lane.b32.xlu0 %v912, 96
        %v1294 = vpop.permute.xlu0 %1293
        %1295 = vrot.lane.b32.xlu0 %v913, 96
        %v1296 = vpop.permute.xlu0 %1295
        %1297 = vrot.lane.b32.xlu0 %v914, 96
        %v1298 = vpop.permute.xlu0 %1297
        %1299 = vrot.lane.b32.xlu0 %v915, 96
        %v1300 = vpop.permute.xlu0 %1299
        %1301 = vrot.lane.b32.xlu0 %v916, 96
        %v1302 = vpop.permute.xlu0 %1301
        %1303 = vrot.lane.b32.xlu0 %v917, 96
        %v1304 = vpop.permute.xlu0 %1303
        %1305 = vrot.lane.b32.xlu0 %v918, 96
        %v1306 = vpop.permute.xlu0 %1305
        %1307 = vrot.lane.b32.xlu0 %v919, 96
        %v1308 = vpop.permute.xlu0 %1307
        %1309 = vrot.lane.b32.xlu0 %v920, 96
        %v1310 = vpop.permute.xlu0 %1309
        %v1312 = vshrl.u32 %v920, 16
        %v1314 = vshll.u32 %v920, 16
        %v1316 = vrot.slane %v1314, 1
        %v1317 = vor.u32 %v1312, %v1316
        %v1319 = vshll.u32 %v938, 16
        %v1321 = vrot.slane %v1319, 1
        %v1322 = vsel %vm940, %v1317, %v1321
        %v1324 = vrot.slane %v920, 1
        %v1325 = vrot.slane %v938, 1
        %v1326 = vsel %vm1197, %v1324, %v1325
        %1327 = vrot.lane.b32.xlu0 %v1203, 32
        %v1328 = vpop.permute.xlu0 %1327
        %1329 = vrot.lane.b32.xlu0 %v1206, 32
        %v1330 = vpop.permute.xlu0 %1329
        %1331 = vrot.lane.b32.xlu0 %v1209, 32
        %v1332 = vpop.permute.xlu0 %1331
        %1333 = vrot.lane.b32.xlu0 %v1212, 32
        %v1334 = vpop.permute.xlu0 %1333
        %1335 = vrot.lane.b32.xlu0 %v1215, 32
        %v1336 = vpop.permute.xlu0 %1335
        %1337 = vrot.lane.b32.xlu0 %v1218, 32
        %v1338 = vpop.permute.xlu0 %1337
        %1339 = vrot.lane.b32.xlu0 %v1221, 32
        %v1340 = vpop.permute.xlu0 %1339
        %1341 = vrot.lane.b32.xlu0 %v1224, 32
        %v1342 = vpop.permute.xlu0 %1341
        %1343 = vrot.lane.b32.xlu0 %v1227, 32
        %v1344 = vpop.permute.xlu0 %1343
        %1345 = vrot.lane.b32.xlu0 %v1230, 32
        %v1346 = vpop.permute.xlu0 %1345
        %1347 = vrot.lane.b32.xlu0 %v1233, 32
        %v1348 = vpop.permute.xlu0 %1347
        %1349 = vrot.lane.b32.xlu0 %v1236, 32
        %v1350 = vpop.permute.xlu0 %1349
        %1351 = vrot.lane.b32.xlu0 %v1239, 32
        %v1352 = vpop.permute.xlu0 %1351
        %1353 = vrot.lane.b32.xlu0 %v1242, 32
        %v1354 = vpop.permute.xlu0 %1353
        %1355 = vrot.lane.b32.xlu0 %v1245, 32
        %v1356 = vpop.permute.xlu0 %1355
        %1357 = vrot.lane.b32.xlu0 %v1326, 32
        %v1358 = vpop.permute.xlu0 %1357
        %1360 = vrot.lane.b32.xlu0 %v906, 64
        %v1361 = vpop.permute.xlu0 %1360
        %1362 = vrot.lane.b32.xlu0 %v907, 64
        %v1363 = vpop.permute.xlu0 %1362
        %1364 = vrot.lane.b32.xlu0 %v908, 64
        %v1365 = vpop.permute.xlu0 %1364
        %1366 = vrot.lane.b32.xlu0 %v909, 64
        %v1367 = vpop.permute.xlu0 %1366
        %1368 = vrot.lane.b32.xlu0 %v910, 64
        %v1369 = vpop.permute.xlu0 %1368
        %1370 = vrot.lane.b32.xlu0 %v911, 64
        %v1371 = vpop.permute.xlu0 %1370
        %1372 = vrot.lane.b32.xlu0 %v912, 64
        %v1373 = vpop.permute.xlu0 %1372
        %1374 = vrot.lane.b32.xlu0 %v913, 64
        %v1375 = vpop.permute.xlu0 %1374
        %1376 = vrot.lane.b32.xlu0 %v914, 64
        %v1377 = vpop.permute.xlu0 %1376
        %1378 = vrot.lane.b32.xlu0 %v915, 64
        %v1379 = vpop.permute.xlu0 %1378
        %1380 = vrot.lane.b32.xlu0 %v916, 64
        %v1381 = vpop.permute.xlu0 %1380
        %1382 = vrot.lane.b32.xlu0 %v917, 64
        %v1383 = vpop.permute.xlu0 %1382
        %1384 = vrot.lane.b32.xlu0 %v918, 64
        %v1385 = vpop.permute.xlu0 %1384
        %1386 = vrot.lane.b32.xlu0 %v919, 64
        %v1387 = vpop.permute.xlu0 %1386
        %1388 = vrot.lane.b32.xlu0 %v920, 64
        %v1389 = vpop.permute.xlu0 %1388
        %1390 = vrot.lane.b32.xlu0 %v921, 64
        %v1391 = vpop.permute.xlu0 %1390
        %v1393 = vshrl.u32 %v921, 16
        %v1395 = vshll.u32 %v921, 16
        %v1397 = vrot.slane %v1395, 1
        %v1398 = vor.u32 %v1393, %v1397
        %v1400 = vshll.u32 %v939, 16
        %v1402 = vrot.slane %v1400, 1
        %v1403 = vsel %vm940, %v1398, %v1402
        %1404 = vrot.lane.b32.xlu0 %v976, 96
        %v1405 = vpop.permute.xlu0 %1404
        %1406 = vrot.lane.b32.xlu0 %v988, 96
        %v1407 = vpop.permute.xlu0 %1406
        %1408 = vrot.lane.b32.xlu0 %v1000, 96
        %v1409 = vpop.permute.xlu0 %1408
        %1410 = vrot.lane.b32.xlu0 %v1012, 96
        %v1411 = vpop.permute.xlu0 %1410
        %1412 = vrot.lane.b32.xlu0 %v1024, 96
        %v1413 = vpop.permute.xlu0 %1412
        %1414 = vrot.lane.b32.xlu0 %v1036, 96
        %v1415 = vpop.permute.xlu0 %1414
        %1416 = vrot.lane.b32.xlu0 %v1048, 96
        %v1417 = vpop.permute.xlu0 %1416
        %1418 = vrot.lane.b32.xlu0 %v1060, 96
        %v1419 = vpop.permute.xlu0 %1418
        %1420 = vrot.lane.b32.xlu0 %v1072, 96
        %v1421 = vpop.permute.xlu0 %1420
        %1422 = vrot.lane.b32.xlu0 %v1084, 96
        %v1423 = vpop.permute.xlu0 %1422
        %1424 = vrot.lane.b32.xlu0 %v1096, 96
        %v1425 = vpop.permute.xlu0 %1424
        %1426 = vrot.lane.b32.xlu0 %v1108, 96
        %v1427 = vpop.permute.xlu0 %1426
        %1428 = vrot.lane.b32.xlu0 %v1120, 96
        %v1429 = vpop.permute.xlu0 %1428
        %1430 = vrot.lane.b32.xlu0 %v1132, 96
        %v1431 = vpop.permute.xlu0 %1430
        %1432 = vrot.lane.b32.xlu0 %v1322, 96
        %v1433 = vpop.permute.xlu0 %1432
        %1434 = vrot.lane.b32.xlu0 %v1403, 96
        %v1435 = vpop.permute.xlu0 %1434
        %v1437 = vrot.slane %v921, 1
        %v1438 = vrot.slane %v939, 1
        %v1439 = vsel %vm1197, %v1437, %v1438
        %vm1440 = vcmask 261120
        %v1442 = vsel %vm1440, %v904, %v1134
        %v1444 = vsel %vm1440, %v905, %v1136
        %v1446 = vsel %vm1440, %v906, %v1138
        %v1448 = vsel %vm1440, %v907, %v1140
        %v1450 = vsel %vm1440, %v908, %v1142
        %v1452 = vsel %vm1440, %v909, %v1144
        %v1454 = vsel %vm1440, %v910, %v1146
        %v1456 = vsel %vm1440, %v911, %v1148
        %v1458 = vsel %vm1440, %v912, %v1150
        %v1460 = vsel %vm1440, %v913, %v1152
        %v1462 = vsel %vm1440, %v914, %v1154
        %v1464 = vsel %vm1440, %v915, %v1156
        %v1466 = vsel %vm1440, %v916, %v1158
        %v1468 = vsel %vm1440, %v917, %v1160
        %v1470 = vsel %vm1440, %v918, %v1162
        %v1472 = vsel %vm1440, %v919, %v1164
        %vm1473 = vcmask 523264
        %v1475 = vsel %vm1473, %v1442, %v1247
        %v1477 = vsel %vm1473, %v1444, %v1249
        %v1479 = vsel %vm1473, %v1446, %v1251
        %v1481 = vsel %vm1473, %v1448, %v1253
        %v1483 = vsel %vm1473, %v1450, %v1255
        %v1485 = vsel %vm1473, %v1452, %v1257
        %v1487 = vsel %vm1473, %v1454, %v1259
        %v1489 = vsel %vm1473, %v1456, %v1261
        %v1491 = vsel %vm1473, %v1458, %v1263
        %v1493 = vsel %vm1473, %v1460, %v1265
        %v1495 = vsel %vm1473, %v1462, %v1267
        %v1497 = vsel %vm1473, %v1464, %v1269
        %v1499 = vsel %vm1473, %v1466, %v1271
        %v1501 = vsel %vm1473, %v1468, %v1273
        %v1503 = vsel %vm1473, %v1470, %v1275
        %v1505 = vsel %vm1473, %v1472, %v1277
        %vm1506 = vcmask 785408
        %v1508 = vsel %vm1506, %v1475, %v1280
        %v1511 = vsel %vm1506, %v1477, %v1282
        %v1514 = vsel %vm1506, %v1479, %v1284
        %v1517 = vsel %vm1506, %v1481, %v1286
        %v1520 = vsel %vm1506, %v1483, %v1288
        %v1523 = vsel %vm1506, %v1485, %v1290
        %v1526 = vsel %vm1506, %v1487, %v1292
        %v1529 = vsel %vm1506, %v1489, %v1294
        %v1532 = vsel %vm1506, %v1491, %v1296
        %v1535 = vsel %vm1506, %v1493, %v1298
        %v1538 = vsel %vm1506, %v1495, %v1300
        %v1541 = vsel %vm1506, %v1497, %v1302
        %v1544 = vsel %vm1506, %v1499, %v1304
        %v1547 = vsel %vm1506, %v1501, %v1306
        %v1550 = vsel %vm1506, %v1503, %v1308
        %v1553 = vsel %vm1506, %v1505, %v1310
        %v1557 = vsel %vm1440, %v964, %v1328
        %v1560 = vsel %vm1440, %v976, %v1330
        %v1563 = vsel %vm1440, %v988, %v1332
        %v1566 = vsel %vm1440, %v1000, %v1334
        %v1569 = vsel %vm1440, %v1012, %v1336
        %v1572 = vsel %vm1440, %v1024, %v1338
        %v1575 = vsel %vm1440, %v1036, %v1340
        %v1578 = vsel %vm1440, %v1048, %v1342
        %v1581 = vsel %vm1440, %v1060, %v1344
        %v1584 = vsel %vm1440, %v1072, %v1346
        %v1587 = vsel %vm1440, %v1084, %v1348
        %v1590 = vsel %vm1440, %v1096, %v1350
        %v1593 = vsel %vm1440, %v1108, %v1352
        %v1596 = vsel %vm1440, %v1120, %v1354
        %v1599 = vsel %vm1440, %v1132, %v1356
        %v1602 = vsel %vm1440, %v1322, %v1358
        %v1604 = vsel %vm1473, %v1557, %v1361
        %v1606 = vsel %vm1473, %v1560, %v1363
        %v1608 = vsel %vm1473, %v1563, %v1365
        %v1610 = vsel %vm1473, %v1566, %v1367
        %v1612 = vsel %vm1473, %v1569, %v1369
        %v1614 = vsel %vm1473, %v1572, %v1371
        %v1616 = vsel %vm1473, %v1575, %v1373
        %v1618 = vsel %vm1473, %v1578, %v1375
        %v1620 = vsel %vm1473, %v1581, %v1377
        %v1622 = vsel %vm1473, %v1584, %v1379
        %v1624 = vsel %vm1473, %v1587, %v1381
        %v1626 = vsel %vm1473, %v1590, %v1383
        %v1628 = vsel %vm1473, %v1593, %v1385
        %v1630 = vsel %vm1473, %v1596, %v1387
        %v1632 = vsel %vm1473, %v1599, %v1389
        %v1634 = vsel %vm1473, %v1602, %v1391
        %v1636 = vsel %vm1506, %v1604, %v1405
        %v1639 = vsel %vm1506, %v1606, %v1407
        %v1642 = vsel %vm1506, %v1608, %v1409
        %v1645 = vsel %vm1506, %v1610, %v1411
        %v1648 = vsel %vm1506, %v1612, %v1413
        %v1651 = vsel %vm1506, %v1614, %v1415
        %v1654 = vsel %vm1506, %v1616, %v1417
        %v1657 = vsel %vm1506, %v1618, %v1419
        %v1660 = vsel %vm1506, %v1620, %v1421
        %v1663 = vsel %vm1506, %v1622, %v1423
        %v1666 = vsel %vm1506, %v1624, %v1425
        %v1669 = vsel %vm1506, %v1626, %v1427
        %v1672 = vsel %vm1506, %v1628, %v1429
        %v1675 = vsel %vm1506, %v1630, %v1431
        %v1678 = vsel %vm1506, %v1632, %v1433
        %v1681 = vsel %vm1506, %v1634, %v1435
        %v1683 = vld [vmem:[%s4] sm:$0xf]
        %v1684 = vld [vmem:[%s4 + $0x4] sm:$0xf]
        %v1685 = vld [vmem:[%s4 + $0x8] sm:$0xf]
        %v1686 = vld [vmem:[%s4 + $0xc] sm:$0xf]
        %v1687 = vld [vmem:[%s4 + $0x10] sm:$0xf]
        %v1688 = vld [vmem:[%s4 + $0x14] sm:$0xf]
        %v1689 = vld [vmem:[%s4 + $0x18] sm:$0xf]
        %v1690 = vld [vmem:[%s4 + $0x1c] sm:$0xf]
        %v1691 = vld [vmem:[%s4 + $0x20] sm:$0xf]
        %v1692 = vld [vmem:[%s4 + $0x24] sm:$0xf]
        %v1693 = vld [vmem:[%s4 + $0x28] sm:$0xf]
        %v1694 = vld [vmem:[%s4 + $0x2c] sm:$0xf]
        %v1695 = vld [vmem:[%s4 + $0x30] sm:$0xf]
        %v1696 = vld [vmem:[%s4 + $0x34] sm:$0xf]
        %v1697 = vld [vmem:[%s4 + $0x38] sm:$0xf]
        %v1698 = vld [vmem:[%s4 + $0x3c] sm:$0xf]
        %v1699 = vld [vmem:[%s4 + $0x40] sm:$0xf]
        %v1700 = vld [vmem:[%s4 + $0x44] sm:$0xf]
        %v1701 = vld [vmem:[%s4 + $0x48] sm:$0xf]
        %v1702 = vld [vmem:[%s4 + $0x4c] sm:$0xf]
        %v1703 = vld [vmem:[%s4 + $0x50] sm:$0xf]
        %v1704 = vld [vmem:[%s4 + $0x54] sm:$0xf]
        %v1705 = vld [vmem:[%s4 + $0x58] sm:$0xf]
        %v1706 = vld [vmem:[%s4 + $0x5c] sm:$0xf]
        %v1707 = vld [vmem:[%s4 + $0x60] sm:$0xf]
        %v1708 = vld [vmem:[%s4 + $0x64] sm:$0xf]
        %v1709 = vld [vmem:[%s4 + $0x68] sm:$0xf]
        %v1710 = vld [vmem:[%s4 + $0x6c] sm:$0xf]
        %v1711 = vld [vmem:[%s4 + $0x70] sm:$0xf]
        %v1712 = vld [vmem:[%s4 + $0x74] sm:$0xf]
        %v1713 = vld [vmem:[%s4 + $0x78] sm:$0xf]
        %v1714 = vld [vmem:[%s4 + $0x7c] sm:$0xf]
        %v1715 = vld [vmem:[%s4 + $0x80] sm:$0xf]
        %v1716 = vld [vmem:[%s4 + $0x84] sm:$0xf]
        %v1717 = vld [vmem:[%s4 + $0x88] sm:$0xf]
        %v1718 = vld [vmem:[%s4 + $0x8c] sm:$0xf]
        %v1719 = vld [vmem:[%s5] sm:$0x1]
        %v1721 = vlaneseq
        %v1722 = vshrl.u32 %v1721, 7
        %v1723 = vsub.s32 0, %v1722
        %v1724 = vrot.slane %v1719, %v1723
        %v1762 = vunpack.c.l.b16 %v1683
        %v1763 = vunpack.c.l.b16 %v1684
        %v1764 = vunpack.c.l.b16 %v1685
        %v1765 = vunpack.c.l.b16 %v1686
        %v1766 = vunpack.c.l.b16 %v1687
        %v1767 = vunpack.c.l.b16 %v1688
        %v1768 = vunpack.c.l.b16 %v1689
        %v1769 = vunpack.c.l.b16 %v1690
        %v1770 = vunpack.c.l.b16 %v1691
        %v1771 = vunpack.c.l.b16 %v1692
        %v1772 = vunpack.c.l.b16 %v1693
        %v1773 = vunpack.c.l.b16 %v1694
        %v1774 = vunpack.c.l.b16 %v1695
        %v1775 = vunpack.c.l.b16 %v1696
        %v1776 = vunpack.c.l.b16 %v1697
        %v1777 = vunpack.c.l.b16 %v1698
        %v1778 = vunpack.c.l.b16 %v1699
        %v1779 = vunpack.c.l.b16 %v1700
        %v1780 = vunpack.c.l.b16 %v1701
        %v1781 = vunpack.c.l.b16 %v1702
        %v1782 = vunpack.c.l.b16 %v1703
        %v1783 = vunpack.c.l.b16 %v1704
        %v1784 = vunpack.c.l.b16 %v1705
        %v1785 = vunpack.c.l.b16 %v1706
        %v1786 = vunpack.c.l.b16 %v1707
        %v1787 = vunpack.c.l.b16 %v1708
        %v1788 = vunpack.c.l.b16 %v1709
        %v1789 = vunpack.c.l.b16 %v1710
        %v1790 = vunpack.c.l.b16 %v1711
        %v1791 = vunpack.c.l.b16 %v1712
        %v1792 = vunpack.c.l.b16 %v1713
        %v1793 = vunpack.c.l.b16 %v1714
        %v1794 = vunpack.c.l.b16 %v1715
        %v1795 = vunpack.c.l.b16 %v1716
        %v1796 = vunpack.c.l.b16 %v1717
        %v1797 = vunpack.c.l.b16 %v1718
        %v1798 = vpack.c.b16 %v1763, %v1762
        %v1799 = vpack.c.b16 %v1765, %v1764
        %v1800 = vpack.c.b16 %v1767, %v1766
        %v1801 = vpack.c.b16 %v1769, %v1768
        %v1802 = vpack.c.b16 %v1771, %v1770
        %v1803 = vpack.c.b16 %v1773, %v1772
        %v1804 = vpack.c.b16 %v1775, %v1774
        %v1805 = vpack.c.b16 %v1777, %v1776
        %v1806 = vpack.c.b16 %v1779, %v1778
        %v1807 = vpack.c.b16 %v1781, %v1780
        %v1808 = vpack.c.b16 %v1783, %v1782
        %v1809 = vpack.c.b16 %v1785, %v1784
        %v1810 = vpack.c.b16 %v1787, %v1786
        %v1811 = vpack.c.b16 %v1789, %v1788
        %v1812 = vpack.c.b16 %v1791, %v1790
        %v1813 = vpack.c.b16 %v1793, %v1792
        %v1814 = vpack.c.b16 %v1795, %v1794
        %v1815 = vpack.c.b16 %v1797, %v1796
        %v1835 = vsel %vm1440, %v1206, 0
        %v1838 = vsel %vm1440, %v1209, 0
        %v1841 = vsel %vm1440, %v1212, 0
        %v1844 = vsel %vm1440, %v1215, 0
        %v1847 = vsel %vm1440, %v1218, 0
        %v1850 = vsel %vm1440, %v1221, 0
        %v1853 = vsel %vm1440, %v1224, 0
        %v1856 = vsel %vm1440, %v1227, 0
        %v1859 = vsel %vm1440, %v1230, 0
        %v1862 = vsel %vm1440, %v1233, 0
        %v1865 = vsel %vm1440, %v1236, 0
        %v1868 = vsel %vm1440, %v1239, 0
        %v1871 = vsel %vm1440, %v1242, 0
        %v1874 = vsel %vm1440, %v1245, 0
        %v1877 = vsel %vm1440, %v1326, 0
        %v1880 = vsel %vm1440, %v1439, 0
        %1882 = vmatprep.subr.bf16.mxu0 0
        %1883 = vmatpush1.bf16.msra.mxu0 %v1805
        %1884 = vmatprep.subr.bf16.mxu0 0
        %1885 = vmatpush1.bf16.msra.mxu0 %v1804
        %1886 = vmatprep.subr.bf16.mxu0 0
        %1887 = vmatpush1.bf16.msra.mxu0 %v1803
        %1888 = vmatprep.subr.bf16.mxu0 0
        %1889 = vmatpush1.bf16.msra.mxu0 %v1802
        %1890 = vmatprep.subr.bf16.mxu0 0
        %1891 = vmatpush1.bf16.msra.mxu0 %v1801
        %1892 = vmatprep.subr.bf16.mxu0 0
        %1893 = vmatpush1.bf16.msra.mxu0 %v1800
        %1894 = vmatprep.subr.bf16.mxu0 0
        %1895 = vmatpush1.bf16.msra.mxu0 %v1799
        %1896 = vmatprep.subr.bf16.mxu0 0
        %1897 = vmatpush1.bf16.msra.mxu0 %v1798
        %1898 = vmatprep.subr.bf16.mxu0 0
        %1899 = vmatpush2.bf16.msra.mxu0 %v1813
        %1900 = vmatprep.subr.bf16.mxu0 0
        %1901 = vmatpush2.bf16.msra.mxu0 %v1812
        %1902 = vmatprep.subr.bf16.mxu0 0
        %1903 = vmatpush2.bf16.msra.mxu0 %v1811
        %1904 = vmatprep.subr.bf16.mxu0 0
        %1905 = vmatpush2.bf16.msra.mxu0 %v1810
        %1906 = vmatprep.subr.bf16.mxu0 0
        %1907 = vmatpush2.bf16.msra.mxu0 %v1809
        %1908 = vmatprep.subr.bf16.mxu0 0
        %1909 = vmatpush2.bf16.msra.mxu0 %v1808
        %1910 = vmatprep.subr.bf16.mxu0 0
        %1911 = vmatpush2.bf16.msra.mxu0 %v1807
        %1912 = vmatprep.subr.bf16.mxu0 0
        %1913 = vmatpush2.bf16.msra.mxu0 %v1806
        %1914 = vmatprep.mubr.bf16.mxu0 %v1636
        %1915 = vmatmul.mubr.bf16.gmra.mxu0 %v1508
        %v1916 = vpop.f32.mrf.mxu0
        %v1917 = vadd.f32 %v1724, %v1916
        %v1918 = vpop.f32.mrf.mxu0
        %v1919 = vpop.f32.mrf.mxu0
        %v1920 = vadd.f32 %v1724, %v1919
        %v1921 = vpop.f32.mrf.mxu0
        %1922 = vmatprep.mubr.bf16.mxu0 %v1639
        %1923 = vmatmul.mubr.bf16.gmra.mxu0 %v1511
        %v1924 = vpop.f32.mrf.mxu0
        %v1925 = vadd.f32 %v1724, %v1924
        %v1926 = vpop.f32.mrf.mxu0
        %v1927 = vpop.f32.mrf.mxu0
        %v1928 = vadd.f32 %v1724, %v1927
        %v1929 = vpop.f32.mrf.mxu0
        %1930 = vmatprep.mubr.bf16.mxu0 %v1642
        %1931 = vmatmul.mubr.bf16.gmra.mxu0 %v1514
        %v1932 = vpop.f32.mrf.mxu0
        %v1933 = vadd.f32 %v1724, %v1932
        %v1934 = vpop.f32.mrf.mxu0
        %v1935 = vpop.f32.mrf.mxu0
        %v1936 = vadd.f32 %v1724, %v1935
        %v1937 = vpop.f32.mrf.mxu0
        %1938 = vmatprep.mubr.bf16.mxu0 %v1645
        %1939 = vmatmul.mubr.bf16.gmra.mxu0 %v1517
        %v1940 = vpop.f32.mrf.mxu0
        %v1941 = vadd.f32 %v1724, %v1940
        %v1942 = vpop.f32.mrf.mxu0
        %v1943 = vpop.f32.mrf.mxu0
        %v1944 = vadd.f32 %v1724, %v1943
        %v1945 = vpop.f32.mrf.mxu0
        %1946 = vmatprep.mubr.bf16.mxu0 %v1648
        %1947 = vmatmul.mubr.bf16.gmra.mxu0 %v1520
        %v1948 = vpop.f32.mrf.mxu0
        %v1949 = vadd.f32 %v1724, %v1948
        %v1950 = vpop.f32.mrf.mxu0
        %v1951 = vpop.f32.mrf.mxu0
        %v1952 = vadd.f32 %v1724, %v1951
        %v1953 = vpop.f32.mrf.mxu0
        %1954 = vmatprep.mubr.bf16.mxu0 %v1651
        %1955 = vmatmul.mubr.bf16.gmra.mxu0 %v1523
        %v1956 = vpop.f32.mrf.mxu0
        %v1957 = vadd.f32 %v1724, %v1956
        %v1958 = vpop.f32.mrf.mxu0
        %v1959 = vpop.f32.mrf.mxu0
        %v1960 = vadd.f32 %v1724, %v1959
        %v1961 = vpop.f32.mrf.mxu0
        %1962 = vmatprep.mubr.bf16.mxu0 %v1654
        %1963 = vmatmul.mubr.bf16.gmra.mxu0 %v1526
        %v1964 = vpop.f32.mrf.mxu0
        %v1965 = vadd.f32 %v1724, %v1964
        %v1966 = vpop.f32.mrf.mxu0
        %v1967 = vpop.f32.mrf.mxu0
        %v1968 = vadd.f32 %v1724, %v1967
        %v1969 = vpop.f32.mrf.mxu0
        %1970 = vmatprep.mubr.bf16.mxu0 %v1657
        %1971 = vmatmul.mubr.bf16.gmra.mxu0 %v1529
        %v1972 = vpop.f32.mrf.mxu0
        %v1973 = vadd.f32 %v1724, %v1972
        %v1974 = vpop.f32.mrf.mxu0
        %v1975 = vpop.f32.mrf.mxu0
        %v1976 = vadd.f32 %v1724, %v1975
        %v1977 = vpop.f32.mrf.mxu0
        %1978 = vmatprep.mubr.bf16.mxu0 %v1660
        %1979 = vmatmul.mubr.bf16.gmra.mxu0 %v1532
        %v1980 = vpop.f32.mrf.mxu0
        %v1981 = vadd.f32 %v1724, %v1980
        %v1982 = vpop.f32.mrf.mxu0
        %v1983 = vpop.f32.mrf.mxu0
        %v1984 = vadd.f32 %v1724, %v1983
        %v1985 = vpop.f32.mrf.mxu0
        %1986 = vmatprep.mubr.bf16.mxu0 %v1663
        %1987 = vmatmul.mubr.bf16.gmra.mxu0 %v1535
        %v1988 = vpop.f32.mrf.mxu0
        %v1989 = vadd.f32 %v1724, %v1988
        %v1990 = vpop.f32.mrf.mxu0
        %v1991 = vpop.f32.mrf.mxu0
        %v1992 = vadd.f32 %v1724, %v1991
        %v1993 = vpop.f32.mrf.mxu0
        %1994 = vmatprep.mubr.bf16.mxu0 %v1666
        %1995 = vmatmul.mubr.bf16.gmra.mxu0 %v1538
        %v1996 = vpop.f32.mrf.mxu0
        %v1997 = vadd.f32 %v1724, %v1996
        %v1998 = vpop.f32.mrf.mxu0
        %v1999 = vpop.f32.mrf.mxu0
        %v2000 = vadd.f32 %v1724, %v1999
        %v2001 = vpop.f32.mrf.mxu0
        %2002 = vmatprep.mubr.bf16.mxu0 %v1669
        %2003 = vmatmul.mubr.bf16.gmra.mxu0 %v1541
        %v2004 = vpop.f32.mrf.mxu0
        %v2005 = vadd.f32 %v1724, %v2004
        %v2006 = vpop.f32.mrf.mxu0
        %v2007 = vpop.f32.mrf.mxu0
        %v2008 = vadd.f32 %v1724, %v2007
        %v2009 = vpop.f32.mrf.mxu0
        %2010 = vmatprep.mubr.bf16.mxu0 %v1672
        %2011 = vmatmul.mubr.bf16.gmra.mxu0 %v1544
        %v2012 = vpop.f32.mrf.mxu0
        %v2013 = vadd.f32 %v1724, %v2012
        %v2014 = vpop.f32.mrf.mxu0
        %v2015 = vpop.f32.mrf.mxu0
        %v2016 = vadd.f32 %v1724, %v2015
        %v2017 = vpop.f32.mrf.mxu0
        %2018 = vmatprep.mubr.bf16.mxu0 %v1675
        %2019 = vmatmul.mubr.bf16.gmra.mxu0 %v1547
        %v2020 = vpop.f32.mrf.mxu0
        %v2021 = vadd.f32 %v1724, %v2020
        %v2022 = vpop.f32.mrf.mxu0
        %v2023 = vpop.f32.mrf.mxu0
        %v2024 = vadd.f32 %v1724, %v2023
        %v2025 = vpop.f32.mrf.mxu0
        %2026 = vmatprep.mubr.bf16.mxu0 %v1678
        %2027 = vmatmul.mubr.bf16.gmra.mxu0 %v1550
        %v2028 = vpop.f32.mrf.mxu0
        %v2029 = vadd.f32 %v1724, %v2028
        %v2030 = vpop.f32.mrf.mxu0
        %v2031 = vpop.f32.mrf.mxu0
        %v2032 = vadd.f32 %v1724, %v2031
        %v2033 = vpop.f32.mrf.mxu0
        %2034 = vmatprep.mubr.bf16.mxu0 %v1681
        %2035 = vmatmul.mubr.bf16.gmra.mxu0 %v1553
        %v2036 = vpop.f32.mrf.mxu0
        %v2037 = vadd.f32 %v1724, %v2036
        %v2038 = vpop.f32.mrf.mxu0
        %v2039 = vpop.f32.mrf.mxu0
        %v2040 = vadd.f32 %v1724, %v2039
        %v2041 = vpop.f32.mrf.mxu0
        %2042 = vdwg.mxu0
        %2043 = vmatprep.subr.bf16.mxu0 0
        %2044 = vmatpush1.bf16.msra.mxu0 0
        %2045 = vmatprep.subr.bf16.mxu0 0
        %2046 = vmatpush1.bf16.msra.mxu0 0
        %2047 = vmatprep.subr.bf16.mxu0 0
        %2048 = vmatpush1.bf16.msra.mxu0 0
        %2049 = vmatprep.subr.bf16.mxu0 0
        %2050 = vmatpush1.bf16.msra.mxu0 0
        %2051 = vmatprep.subr.bf16.mxu0 0
        %2052 = vmatpush1.bf16.msra.mxu0 0
        %2053 = vmatprep.subr.bf16.mxu0 0
        %2054 = vmatpush1.bf16.msra.mxu0 0
        %2055 = vmatprep.subr.bf16.mxu0 0
        %2056 = vmatpush1.bf16.msra.mxu0 %v1815
        %2057 = vmatprep.subr.bf16.mxu0 0
        %2058 = vmatpush1.bf16.msra.mxu0 %v1814
        %2059 = vmatprep.subr.bf16.mxu0 0
        %2060 = vmatpush2.bf16.msra.mxu0 0
        %2061 = vmatprep.subr.bf16.mxu0 0
        %2062 = vmatpush2.bf16.msra.mxu0 0
        %2063 = vmatprep.subr.bf16.mxu0 0
        %2064 = vmatpush2.bf16.msra.mxu0 0
        %2065 = vmatprep.subr.bf16.mxu0 0
        %2066 = vmatpush2.bf16.msra.mxu0 0
        %2067 = vmatprep.subr.bf16.mxu0 0
        %2068 = vmatpush2.bf16.msra.mxu0 0
        %2069 = vmatprep.subr.bf16.mxu0 0
        %2070 = vmatpush2.bf16.msra.mxu0 0
        %2071 = vmatprep.subr.bf16.mxu0 0
        %2072 = vmatpush2.bf16.msra.mxu0 0
        %2073 = vmatprep.subr.bf16.mxu0 0
        %2074 = vmatpush2.bf16.msra.mxu0 0
        %2075 = vmatprep.mubr.bf16.mxu0 0
        %2076 = vmatmul.mubr.bf16.gmra.mxu0 %v1835
        %v2077 = vpop.f32.mrf.mxu0
        %v2078 = vadd.f32 %v1917, %v2077
        %v2079 = vpop.f32.mrf.mxu0
        %v2080 = vpop.f32.mrf.mxu0
        %v2081 = vadd.f32 %v1920, %v2080
        %v2082 = vpop.f32.mrf.mxu0
        %2083 = vmatprep.mubr.bf16.mxu0 0
        %2084 = vmatmul.mubr.bf16.gmra.mxu0 %v1838
        %v2085 = vpop.f32.mrf.mxu0
        %v2086 = vadd.f32 %v1925, %v2085
        %v2087 = vpop.f32.mrf.mxu0
        %v2088 = vpop.f32.mrf.mxu0
        %v2089 = vadd.f32 %v1928, %v2088
        %v2090 = vpop.f32.mrf.mxu0
        %2091 = vmatprep.mubr.bf16.mxu0 0
        %2092 = vmatmul.mubr.bf16.gmra.mxu0 %v1841
        %v2093 = vpop.f32.mrf.mxu0
        %v2094 = vadd.f32 %v1933, %v2093
        %v2095 = vpop.f32.mrf.mxu0
        %v2096 = vpop.f32.mrf.mxu0
        %v2097 = vadd.f32 %v1936, %v2096
        %v2098 = vpop.f32.mrf.mxu0
        %2099 = vmatprep.mubr.bf16.mxu0 0
        %2100 = vmatmul.mubr.bf16.gmra.mxu0 %v1844
        %v2101 = vpop.f32.mrf.mxu0
        %v2102 = vadd.f32 %v1941, %v2101
        %v2103 = vpop.f32.mrf.mxu0
        %v2104 = vpop.f32.mrf.mxu0
        %v2105 = vadd.f32 %v1944, %v2104
        %v2106 = vpop.f32.mrf.mxu0
        %2107 = vmatprep.mubr.bf16.mxu0 0
        %2108 = vmatmul.mubr.bf16.gmra.mxu0 %v1847
        %v2109 = vpop.f32.mrf.mxu0
        %v2110 = vadd.f32 %v1949, %v2109
        %v2111 = vpop.f32.mrf.mxu0
        %v2112 = vpop.f32.mrf.mxu0
        %v2113 = vadd.f32 %v1952, %v2112
        %v2114 = vpop.f32.mrf.mxu0
        %2115 = vmatprep.mubr.bf16.mxu0 0
        %2116 = vmatmul.mubr.bf16.gmra.mxu0 %v1850
        %v2117 = vpop.f32.mrf.mxu0
        %v2118 = vadd.f32 %v1957, %v2117
        %v2119 = vpop.f32.mrf.mxu0
        %v2120 = vpop.f32.mrf.mxu0
        %v2121 = vadd.f32 %v1960, %v2120
        %v2122 = vpop.f32.mrf.mxu0
        %2123 = vmatprep.mubr.bf16.mxu0 0
        %2124 = vmatmul.mubr.bf16.gmra.mxu0 %v1853
        %v2125 = vpop.f32.mrf.mxu0
        %v2126 = vadd.f32 %v1965, %v2125
        %v2127 = vpop.f32.mrf.mxu0
        %v2128 = vpop.f32.mrf.mxu0
        %v2129 = vadd.f32 %v1968, %v2128
        %v2130 = vpop.f32.mrf.mxu0
        %2131 = vmatprep.mubr.bf16.mxu0 0
        %2132 = vmatmul.mubr.bf16.gmra.mxu0 %v1856
        %v2133 = vpop.f32.mrf.mxu0
        %v2134 = vadd.f32 %v1973, %v2133
        %v2135 = vpop.f32.mrf.mxu0
        %v2136 = vpop.f32.mrf.mxu0
        %v2137 = vadd.f32 %v1976, %v2136
        %v2138 = vpop.f32.mrf.mxu0
        %2139 = vmatprep.mubr.bf16.mxu0 0
        %2140 = vmatmul.mubr.bf16.gmra.mxu0 %v1859
        %v2141 = vpop.f32.mrf.mxu0
        %v2142 = vadd.f32 %v1981, %v2141
        %v2143 = vpop.f32.mrf.mxu0
        %v2144 = vpop.f32.mrf.mxu0
        %v2145 = vadd.f32 %v1984, %v2144
        %v2146 = vpop.f32.mrf.mxu0
        %2147 = vmatprep.mubr.bf16.mxu0 0
        %2148 = vmatmul.mubr.bf16.gmra.mxu0 %v1862
        %v2149 = vpop.f32.mrf.mxu0
        %v2150 = vadd.f32 %v1989, %v2149
        %v2151 = vpop.f32.mrf.mxu0
        %v2152 = vpop.f32.mrf.mxu0
        %v2153 = vadd.f32 %v1992, %v2152
        %v2154 = vpop.f32.mrf.mxu0
        %2155 = vmatprep.mubr.bf16.mxu0 0
        %2156 = vmatmul.mubr.bf16.gmra.mxu0 %v1865
        %v2157 = vpop.f32.mrf.mxu0
        %v2158 = vadd.f32 %v1997, %v2157
        %v2159 = vpop.f32.mrf.mxu0
        %v2160 = vpop.f32.mrf.mxu0
        %v2161 = vadd.f32 %v2000, %v2160
        %v2162 = vpop.f32.mrf.mxu0
        %2163 = vmatprep.mubr.bf16.mxu0 0
        %2164 = vmatmul.mubr.bf16.gmra.mxu0 %v1868
        %v2165 = vpop.f32.mrf.mxu0
        %v2166 = vadd.f32 %v2005, %v2165
        %v2167 = vpop.f32.mrf.mxu0
        %v2168 = vpop.f32.mrf.mxu0
        %v2169 = vadd.f32 %v2008, %v2168
        %v2170 = vpop.f32.mrf.mxu0
        %2171 = vmatprep.mubr.bf16.mxu0 0
        %2172 = vmatmul.mubr.bf16.gmra.mxu0 %v1871
        %v2173 = vpop.f32.mrf.mxu0
        %v2174 = vadd.f32 %v2013, %v2173
        %v2175 = vpop.f32.mrf.mxu0
        %v2176 = vpop.f32.mrf.mxu0
        %v2177 = vadd.f32 %v2016, %v2176
        %v2178 = vpop.f32.mrf.mxu0
        %2179 = vmatprep.mubr.bf16.mxu0 0
        %2180 = vmatmul.mubr.bf16.gmra.mxu0 %v1874
        %v2181 = vpop.f32.mrf.mxu0
        %v2182 = vadd.f32 %v2021, %v2181
        %v2183 = vpop.f32.mrf.mxu0
        %v2184 = vpop.f32.mrf.mxu0
        %v2185 = vadd.f32 %v2024, %v2184
        %v2186 = vpop.f32.mrf.mxu0
        %2187 = vmatprep.mubr.bf16.mxu0 0
        %2188 = vmatmul.mubr.bf16.gmra.mxu0 %v1877
        %v2189 = vpop.f32.mrf.mxu0
        %v2190 = vadd.f32 %v2029, %v2189
        %v2191 = vpop.f32.mrf.mxu0
        %v2192 = vpop.f32.mrf.mxu0
        %v2193 = vadd.f32 %v2032, %v2192
        %v2194 = vpop.f32.mrf.mxu0
        %2195 = vmatprep.mubr.bf16.mxu0 0
        %2196 = vmatmul.mubr.bf16.gmra.mxu0 %v1880
        %v2197 = vpop.f32.mrf.mxu0
        %v2198 = vadd.f32 %v2037, %v2197
        %v2199 = vpop.f32.mrf.mxu0
        %v2200 = vpop.f32.mrf.mxu0
        %v2201 = vadd.f32 %v2040, %v2200
        %v2202 = vpop.f32.mrf.mxu0
        %2203 = vdwg.mxu0
        %v2204 = vmax.f32 %v2078, 0.0
        %v2205 = vmax.f32 %v2081, 0.0
        %v2206 = vmax.f32 %v2086, 0.0
        %v2207 = vmax.f32 %v2089, 0.0
        %v2208 = vmax.f32 %v2094, 0.0
        %v2209 = vmax.f32 %v2097, 0.0
        %v2210 = vmax.f32 %v2102, 0.0
        %v2211 = vmax.f32 %v2105, 0.0
        %v2212 = vmax.f32 %v2110, 0.0
        %v2213 = vmax.f32 %v2113, 0.0
        %v2214 = vmax.f32 %v2118, 0.0
        %v2215 = vmax.f32 %v2121, 0.0
        %v2216 = vmax.f32 %v2126, 0.0
        %v2217 = vmax.f32 %v2129, 0.0
        %v2218 = vmax.f32 %v2134, 0.0
        %v2219 = vmax.f32 %v2137, 0.0
        %v2220 = vmax.f32 %v2142, 0.0
        %v2221 = vmax.f32 %v2145, 0.0
        %v2222 = vmax.f32 %v2150, 0.0
        %v2223 = vmax.f32 %v2153, 0.0
        %v2224 = vmax.f32 %v2158, 0.0
        %v2225 = vmax.f32 %v2161, 0.0
        %v2226 = vmax.f32 %v2166, 0.0
        %v2227 = vmax.f32 %v2169, 0.0
        %v2228 = vmax.f32 %v2174, 0.0
        %v2229 = vmax.f32 %v2177, 0.0
        %v2230 = vmax.f32 %v2182, 0.0
        %v2231 = vmax.f32 %v2185, 0.0
        %v2232 = vmax.f32 %v2190, 0.0
        %v2233 = vmax.f32 %v2193, 0.0
        %v2234 = vmax.f32 %v2198, 0.0
        %v2235 = vmax.f32 %v2201, 0.0
        %v2236 = vpack.c.bf16 %v2205, %v2204
        %v2237 = vpack.c.bf16 %v2207, %v2206
        %v2238 = vpack.c.bf16 %v2209, %v2208
        %v2239 = vpack.c.bf16 %v2211, %v2210
        %v2240 = vpack.c.bf16 %v2213, %v2212
        %v2241 = vpack.c.bf16 %v2215, %v2214
        %v2242 = vpack.c.bf16 %v2217, %v2216
        %v2243 = vpack.c.bf16 %v2219, %v2218
        %v2244 = vpack.c.bf16 %v2221, %v2220
        %v2245 = vpack.c.bf16 %v2223, %v2222
        %v2246 = vpack.c.bf16 %v2225, %v2224
        %v2247 = vpack.c.bf16 %v2227, %v2226
        %v2248 = vpack.c.bf16 %v2229, %v2228
        %v2249 = vpack.c.bf16 %v2231, %v2230
        %v2250 = vpack.c.bf16 %v2233, %v2232
        %v2251 = vpack.c.bf16 %v2235, %v2234
        %v2252 = vld [vmem:[%s6] sm:$0xf]
        %v2253 = vld [vmem:[%s6 + $0x4] sm:$0xf]
        %v2254 = vld [vmem:[%s6 + $0x8] sm:$0xf]
        %v2255 = vld [vmem:[%s6 + $0xc] sm:$0xf]
        %v2256 = vld [vmem:[%s7] sm:$0x1]
        %v2258 = vlaneseq
        %v2259 = vshrl.u32 %v2258, 7
        %v2260 = vsub.s32 0, %v2259
        %v2261 = vrot.slane %v2256, %v2260
        %v2267 = vunpack.c.l.b16 %v2252
        %v2268 = vunpack.c.l.b16 %v2253
        %v2269 = vunpack.c.l.b16 %v2254
        %v2270 = vunpack.c.l.b16 %v2255
        %v2271 = vpack.c.b16 %v2268, %v2267
        %v2272 = vpack.c.b16 %v2270, %v2269
        %v2276 = vsel %vm1440, %v2236, 0
        %v2279 = vsel %vm1440, %v2237, 0
        %v2282 = vsel %vm1440, %v2238, 0
        %v2285 = vsel %vm1440, %v2239, 0
        %v2288 = vsel %vm1440, %v2240, 0
        %v2291 = vsel %vm1440, %v2241, 0
        %v2294 = vsel %vm1440, %v2242, 0
        %v2297 = vsel %vm1440, %v2243, 0
        %v2300 = vsel %vm1440, %v2244, 0
        %v2303 = vsel %vm1440, %v2245, 0
        %v2306 = vsel %vm1440, %v2246, 0
        %v2309 = vsel %vm1440, %v2247, 0
        %v2312 = vsel %vm1440, %v2248, 0
        %v2315 = vsel %vm1440, %v2249, 0
        %v2318 = vsel %vm1440, %v2250, 0
        %v2321 = vsel %vm1440, %v2251, 0
        %2323 = vmatprep.subr.bf16.mxu0 0
        %2324 = vmatpush1.bf16.msra.mxu0 0
        %2325 = vmatprep.subr.bf16.mxu0 0
        %2326 = vmatpush1.bf16.msra.mxu0 0
        %2327 = vmatprep.subr.bf16.mxu0 0
        %2328 = vmatpush1.bf16.msra.mxu0 0
        %2329 = vmatprep.subr.bf16.mxu0 0
        %2330 = vmatpush1.bf16.msra.mxu0 0
        %2331 = vmatprep.subr.bf16.mxu0 0
        %2332 = vmatpush1.bf16.msra.mxu0 0
        %2333 = vmatprep.subr.bf16.mxu0 0
        %2334 = vmatpush1.bf16.msra.mxu0 0
        %2335 = vmatprep.subr.bf16.mxu0 0
        %2336 = vmatpush1.bf16.msra.mxu0 %v2272
        %2337 = vmatprep.subr.bf16.mxu0 0
        %2338 = vmatpush1.bf16.msra.mxu0 %v2271
        %2339 = vmatprep.subr.bf16.mxu0 0
        %2340 = vmatpush2.bf16.msra.mxu0 0
        %2341 = vmatprep.subr.bf16.mxu0 0
        %2342 = vmatpush2.bf16.msra.mxu0 0
        %2343 = vmatprep.subr.bf16.mxu0 0
        %2344 = vmatpush2.bf16.msra.mxu0 0
        %2345 = vmatprep.subr.bf16.mxu0 0
        %2346 = vmatpush2.bf16.msra.mxu0 0
        %2347 = vmatprep.subr.bf16.mxu0 0
        %2348 = vmatpush2.bf16.msra.mxu0 0
        %2349 = vmatprep.subr.bf16.mxu0 0
        %2350 = vmatpush2.bf16.msra.mxu0 0
        %2351 = vmatprep.subr.bf16.mxu0 0
        %2352 = vmatpush2.bf16.msra.mxu0 0
        %2353 = vmatprep.subr.bf16.mxu0 0
        %2354 = vmatpush2.bf16.msra.mxu0 0
        %2355 = vmatprep.mubr.bf16.mxu0 0
        %2356 = vmatmul.mubr.bf16.gmra.mxu0 %v2276
        %v2357 = vpop.f32.mrf.mxu0
        %v2358 = vadd.f32 %v2261, %v2357
        %v2359 = vpop.f32.mrf.mxu0
        %v2360 = vpop.f32.mrf.mxu0
        %v2361 = vadd.f32 %v2261, %v2360
        %v2362 = vpop.f32.mrf.mxu0
        %2363 = vmatprep.mubr.bf16.mxu0 0
        %2364 = vmatmul.mubr.bf16.gmra.mxu0 %v2279
        %v2365 = vpop.f32.mrf.mxu0
        %v2366 = vadd.f32 %v2261, %v2365
        %v2367 = vpop.f32.mrf.mxu0
        %v2368 = vpop.f32.mrf.mxu0
        %v2369 = vadd.f32 %v2261, %v2368
        %v2370 = vpop.f32.mrf.mxu0
        %2371 = vmatprep.mubr.bf16.mxu0 0
        %2372 = vmatmul.mubr.bf16.gmra.mxu0 %v2282
        %v2373 = vpop.f32.mrf.mxu0
        %v2374 = vadd.f32 %v2261, %v2373
        %v2375 = vpop.f32.mrf.mxu0
        %v2376 = vpop.f32.mrf.mxu0
        %v2377 = vadd.f32 %v2261, %v2376
        %v2378 = vpop.f32.mrf.mxu0
        %2379 = vmatprep.mubr.bf16.mxu0 0
        %2380 = vmatmul.mubr.bf16.gmra.mxu0 %v2285
        %v2381 = vpop.f32.mrf.mxu0
        %v2382 = vadd.f32 %v2261, %v2381
        %v2383 = vpop.f32.mrf.mxu0
        %v2384 = vpop.f32.mrf.mxu0
        %v2385 = vadd.f32 %v2261, %v2384
        %v2386 = vpop.f32.mrf.mxu0
        %2387 = vmatprep.mubr.bf16.mxu0 0
        %2388 = vmatmul.mubr.bf16.gmra.mxu0 %v2288
        %v2389 = vpop.f32.mrf.mxu0
        %v2390 = vadd.f32 %v2261, %v2389
        %v2391 = vpop.f32.mrf.mxu0
        %v2392 = vpop.f32.mrf.mxu0
        %v2393 = vadd.f32 %v2261, %v2392
        %v2394 = vpop.f32.mrf.mxu0
        %2395 = vmatprep.mubr.bf16.mxu0 0
        %2396 = vmatmul.mubr.bf16.gmra.mxu0 %v2291
        %v2397 = vpop.f32.mrf.mxu0
        %v2398 = vadd.f32 %v2261, %v2397
        %v2399 = vpop.f32.mrf.mxu0
        %v2400 = vpop.f32.mrf.mxu0
        %v2401 = vadd.f32 %v2261, %v2400
        %v2402 = vpop.f32.mrf.mxu0
        %2403 = vmatprep.mubr.bf16.mxu0 0
        %2404 = vmatmul.mubr.bf16.gmra.mxu0 %v2294
        %v2405 = vpop.f32.mrf.mxu0
        %v2406 = vadd.f32 %v2261, %v2405
        %v2407 = vpop.f32.mrf.mxu0
        %v2408 = vpop.f32.mrf.mxu0
        %v2409 = vadd.f32 %v2261, %v2408
        %v2410 = vpop.f32.mrf.mxu0
        %2411 = vmatprep.mubr.bf16.mxu0 0
        %2412 = vmatmul.mubr.bf16.gmra.mxu0 %v2297
        %v2413 = vpop.f32.mrf.mxu0
        %v2414 = vadd.f32 %v2261, %v2413
        %v2415 = vpop.f32.mrf.mxu0
        %v2416 = vpop.f32.mrf.mxu0
        %v2417 = vadd.f32 %v2261, %v2416
        %v2418 = vpop.f32.mrf.mxu0
        %2419 = vmatprep.mubr.bf16.mxu0 0
        %2420 = vmatmul.mubr.bf16.gmra.mxu0 %v2300
        %v2421 = vpop.f32.mrf.mxu0
        %v2422 = vadd.f32 %v2261, %v2421
        %v2423 = vpop.f32.mrf.mxu0
        %v2424 = vpop.f32.mrf.mxu0
        %v2425 = vadd.f32 %v2261, %v2424
        %v2426 = vpop.f32.mrf.mxu0
        %2427 = vmatprep.mubr.bf16.mxu0 0
        %2428 = vmatmul.mubr.bf16.gmra.mxu0 %v2303
        %v2429 = vpop.f32.mrf.mxu0
        %v2430 = vadd.f32 %v2261, %v2429
        %v2431 = vpop.f32.mrf.mxu0
        %v2432 = vpop.f32.mrf.mxu0
        %v2433 = vadd.f32 %v2261, %v2432
        %v2434 = vpop.f32.mrf.mxu0
        %2435 = vmatprep.mubr.bf16.mxu0 0
        %2436 = vmatmul.mubr.bf16.gmra.mxu0 %v2306
        %v2437 = vpop.f32.mrf.mxu0
        %v2438 = vadd.f32 %v2261, %v2437
        %v2439 = vpop.f32.mrf.mxu0
        %v2440 = vpop.f32.mrf.mxu0
        %v2441 = vadd.f32 %v2261, %v2440
        %v2442 = vpop.f32.mrf.mxu0
        %2443 = vmatprep.mubr.bf16.mxu0 0
        %2444 = vmatmul.mubr.bf16.gmra.mxu0 %v2309
        %v2445 = vpop.f32.mrf.mxu0
        %v2446 = vadd.f32 %v2261, %v2445
        %v2447 = vpop.f32.mrf.mxu0
        %v2448 = vpop.f32.mrf.mxu0
        %v2449 = vadd.f32 %v2261, %v2448
        %v2450 = vpop.f32.mrf.mxu0
        %2451 = vmatprep.mubr.bf16.mxu0 0
        %2452 = vmatmul.mubr.bf16.gmra.mxu0 %v2312
        %v2453 = vpop.f32.mrf.mxu0
        %v2454 = vadd.f32 %v2261, %v2453
        %v2455 = vpop.f32.mrf.mxu0
        %v2456 = vpop.f32.mrf.mxu0
        %v2457 = vadd.f32 %v2261, %v2456
        %v2458 = vpop.f32.mrf.mxu0
        %2459 = vmatprep.mubr.bf16.mxu0 0
        %2460 = vmatmul.mubr.bf16.gmra.mxu0 %v2315
        %v2461 = vpop.f32.mrf.mxu0
        %v2462 = vadd.f32 %v2261, %v2461
        %v2463 = vpop.f32.mrf.mxu0
        %v2464 = vpop.f32.mrf.mxu0
        %v2465 = vadd.f32 %v2261, %v2464
        %v2466 = vpop.f32.mrf.mxu0
        %2467 = vmatprep.mubr.bf16.mxu0 0
        %2468 = vmatmul.mubr.bf16.gmra.mxu0 %v2318
        %v2469 = vpop.f32.mrf.mxu0
        %v2470 = vadd.f32 %v2261, %v2469
        %v2471 = vpop.f32.mrf.mxu0
        %v2472 = vpop.f32.mrf.mxu0
        %v2473 = vadd.f32 %v2261, %v2472
        %v2474 = vpop.f32.mrf.mxu0
        %2475 = vmatprep.mubr.bf16.mxu0 0
        %2476 = vmatmul.mubr.bf16.gmra.mxu0 %v2321
        %v2477 = vpop.f32.mrf.mxu0
        %v2478 = vadd.f32 %v2261, %v2477
        %v2479 = vpop.f32.mrf.mxu0
        %v2480 = vpop.f32.mrf.mxu0
        %v2481 = vadd.f32 %v2261, %v2480
        %v2482 = vpop.f32.mrf.mxu0
        %2483 = vdwg.mxu0
        %v2484 = vadd.f32 %v2358, %v373
        %v2485 = vadd.f32 %v2361, %v374
        %v2486 = vadd.f32 %v2366, %v375
        %v2487 = vadd.f32 %v2369, %v376
        %v2488 = vadd.f32 %v2374, %v377
        %v2489 = vadd.f32 %v2377, %v378
        %v2490 = vadd.f32 %v2382, %v379
        %v2491 = vadd.f32 %v2385, %v380
        %v2492 = vadd.f32 %v2390, %v381
        %v2493 = vadd.f32 %v2393, %v382
        %v2494 = vadd.f32 %v2398, %v383
        %v2495 = vadd.f32 %v2401, %v384
        %v2496 = vadd.f32 %v2406, %v385
        %v2497 = vadd.f32 %v2409, %v386
        %v2498 = vadd.f32 %v2414, %v387
        %v2499 = vadd.f32 %v2417, %v388
        %v2500 = vadd.f32 %v2422, %v389
        %v2501 = vadd.f32 %v2425, %v390
        %v2502 = vadd.f32 %v2430, %v391
        %v2503 = vadd.f32 %v2433, %v392
        %v2504 = vadd.f32 %v2438, %v393
        %v2505 = vadd.f32 %v2441, %v394
        %v2506 = vadd.f32 %v2446, %v395
        %v2507 = vadd.f32 %v2449, %v396
        %v2508 = vadd.f32 %v2454, %v397
        %v2509 = vadd.f32 %v2457, %v398
        %v2510 = vadd.f32 %v2462, %v399
        %v2511 = vadd.f32 %v2465, %v400
        %v2512 = vadd.f32 %v2470, %v401
        %v2513 = vadd.f32 %v2473, %v402
        %v2514 = vadd.f32 %v2478, %v403
        %v2515 = vadd.f32 %v2481, %v404
        %v2516 = vmax.f32 %v2484, 0.0
        %v2517 = vmax.f32 %v2485, 0.0
        %v2518 = vmax.f32 %v2486, 0.0
        %v2519 = vmax.f32 %v2487, 0.0
        %v2520 = vmax.f32 %v2488, 0.0
        %v2521 = vmax.f32 %v2489, 0.0
        %v2522 = vmax.f32 %v2490, 0.0
        %v2523 = vmax.f32 %v2491, 0.0
        %v2524 = vmax.f32 %v2492, 0.0
        %v2525 = vmax.f32 %v2493, 0.0
        %v2526 = vmax.f32 %v2494, 0.0
        %v2527 = vmax.f32 %v2495, 0.0
        %v2528 = vmax.f32 %v2496, 0.0
        %v2529 = vmax.f32 %v2497, 0.0
        %v2530 = vmax.f32 %v2498, 0.0
        %v2531 = vmax.f32 %v2499, 0.0
        %v2532 = vmax.f32 %v2500, 0.0
        %v2533 = vmax.f32 %v2501, 0.0
        %v2534 = vmax.f32 %v2502, 0.0
        %v2535 = vmax.f32 %v2503, 0.0
        %v2536 = vmax.f32 %v2504, 0.0
        %v2537 = vmax.f32 %v2505, 0.0
        %v2538 = vmax.f32 %v2506, 0.0
        %v2539 = vmax.f32 %v2507, 0.0
        %v2540 = vmax.f32 %v2508, 0.0
        %v2541 = vmax.f32 %v2509, 0.0
        %v2542 = vmax.f32 %v2510, 0.0
        %v2543 = vmax.f32 %v2511, 0.0
        %v2544 = vmax.f32 %v2512, 0.0
        %v2545 = vmax.f32 %v2513, 0.0
        %v2546 = vmax.f32 %v2514, 0.0
        %v2547 = vmax.f32 %v2515, 0.0
        %2548 = vst [vmem:[%s350] sm:$0xff] %v2516
        %2549 = vst [vmem:[%s350 + $0x8] sm:$0xff] %v2517
        %2550 = vst [vmem:[%s350 + $0x10] sm:$0xff] %v2518
        %2551 = vst [vmem:[%s350 + $0x18] sm:$0xff] %v2519
        %2552 = vst [vmem:[%s350 + $0x20] sm:$0xff] %v2520
        %2553 = vst [vmem:[%s350 + $0x28] sm:$0xff] %v2521
        %2554 = vst [vmem:[%s350 + $0x30] sm:$0xff] %v2522
        %2555 = vst [vmem:[%s350 + $0x38] sm:$0xff] %v2523
        %2556 = vst [vmem:[%s350 + $0x40] sm:$0xff] %v2524
        %2557 = vst [vmem:[%s350 + $0x48] sm:$0xff] %v2525
        %2558 = vst [vmem:[%s350 + $0x50] sm:$0xff] %v2526
        %2559 = vst [vmem:[%s350 + $0x58] sm:$0xff] %v2527
        %2560 = vst [vmem:[%s350 + $0x60] sm:$0xff] %v2528
        %2561 = vst [vmem:[%s350 + $0x68] sm:$0xff] %v2529
        %2562 = vst [vmem:[%s350 + $0x70] sm:$0xff] %v2530
        %2563 = vst [vmem:[%s350 + $0x78] sm:$0xff] %v2531
        %2564 = vst [vmem:[%s350 + $0x80] sm:$0xff] %v2532
        %2565 = vst [vmem:[%s350 + $0x88] sm:$0xff] %v2533
        %2566 = vst [vmem:[%s350 + $0x90] sm:$0xff] %v2534
        %2567 = vst [vmem:[%s350 + $0x98] sm:$0xff] %v2535
        %2568 = vst [vmem:[%s350 + $0xa0] sm:$0xff] %v2536
        %2569 = vst [vmem:[%s350 + $0xa8] sm:$0xff] %v2537
        %2570 = vst [vmem:[%s350 + $0xb0] sm:$0xff] %v2538
        %2571 = vst [vmem:[%s350 + $0xb8] sm:$0xff] %v2539
        %2572 = vst [vmem:[%s350 + $0xc0] sm:$0xff] %v2540
        %2573 = vst [vmem:[%s350 + $0xc8] sm:$0xff] %v2541
        %2574 = vst [vmem:[%s350 + $0xd0] sm:$0xff] %v2542
        %2575 = vst [vmem:[%s350 + $0xd8] sm:$0xff] %v2543
        %2576 = vst [vmem:[%s350 + $0xe0] sm:$0xff] %v2544
        %2577 = vst [vmem:[%s350 + $0xe8] sm:$0xff] %v2545
        %2578 = vst [vmem:[%s350 + $0xf0] sm:$0xff] %v2546
        %2579 = vst [vmem:[%s350 + $0xf8] sm:$0xff] %v2547
        %s2580 = sand.u32 %s226, 1
        %s2581 = scalar_lea.sflag [#allocation3], %s2580
        %s2582 = sand.u32 %s226, 1
        %s2583 = smul.addr %s2582, 256
        %s2584 = scalar_lea.vmem [#allocation2], %s2583
        // Predicated region
        $region53: #{bottleneck_forward.1} parent=51 // pred_check
          %p2585 = pneg %p236
        $region54: #{bottleneck_forward.1} parent=51 // pred_check_branch
          %2587 = sbr.rel (%p2585) target = $region56
        $region55: #{bottleneck_forward.1} parent=51 // pred_region
          %s2588 = smul.u32 16, %s27
          %s2590 = ssub.s32 4096, 4096
          %2591 = vsyncadd %s2581, %s2590
          %s2592 = smul.addr %s2588, 2
          %s2593 = smul.addr %s26, 32
          %s2594 = sadd.s32 %s2592, %s2593
          %s2595 = smul.addr %s2594, 128
          %s2596 = scalar_lea.hbm %s8, %s2595
          %s2597 = sshll.u32 %s2584, 4
          %s2598 = int_to_ptr.vmem [resolvable:$true] %s2597
          %2603 = dma.vmem_to_hbm [thread:$0]  %s2598, 4096, %s2596, %s2581, 128, 128, 8
        $region56: #{bottleneck_forward.1} parent=51 // pred_fallthru
          _
      $region52: #{bottleneck_forward.1} parent=5 // pred_fallthru
        _
      %p2604 = scmp.le.s32.totalorder 2, %s17
      // Predicated region
      $region57: #{bottleneck_forward.1} parent=5 // pred_check
        %p2605 = pneg %p2604
      $region58: #{bottleneck_forward.1} parent=5 // pred_check_branch
        %2607 = sbr.rel (%p2605) target = $region60
      $region59: #{bottleneck_forward.1} parent=5 // pred_region
        %s2608 = ssub.s32 %s17, 2
        // Predicated region
        $region61: #{bottleneck_forward.1} parent=59 // pred_check
          %p2609 = pneg %p242
        $region62: #{bottleneck_forward.1} parent=59 // pred_check_branch
          %2611 = sbr.rel (%p2609) target = $region64
        $region63: #{bottleneck_forward.1} parent=59 // pred_region
          %s2612 = sand.u32 %s227, 1
          %s2613 = scalar_lea.sflag [#allocation3], %s2612
          %s2614 = sand.u32 %s227, 1
          %s2615 = smul.addr %s2614, 256
          %s2616 = scalar_lea.vmem [#allocation2], %s2615
          %2617 = dma.done %s2613, 4096
        $region64: #{bottleneck_forward.1} parent=59 // pred_fallthru
          _
      $region60: #{bottleneck_forward.1} parent=5 // pred_fallthru
        _
    $region6: #{bottleneck_forward.1} parent=1 // loop_footer
      %s21 = sadd.s32 1, %s17
    $region7: #{bottleneck_forward.1} parent=1 // loop_footer_branch
      %16 = sbr.rel target = $region3
    $region8: #{bottleneck_forward.1} parent=1 // loop_exit
      _
    %2618 = vsyncpa [#allocation3], 1
    %s2619 = scalar_lea.sflag [#allocation3], 1
    %2620 = vsyncpa %s2619, 1

</llo_original>
